<compile_context>
chip_gen: v7x
topology: tpu7x:2x2x1
jax: 0.10.0
libtpu: 0.0.40
codegen_flags: <defaults>
</compile_context>

<pallas_src>
import jax
import jax.numpy as jnp
from jax import lax
from jax.experimental import pallas as pl
from jax.experimental.pallas import tpu as pltpu


# --------------------------------------------------------------------------- #
# Hardware queries / small helpers
# --------------------------------------------------------------------------- #
def _vmem_capacity_bytes():
    try:
        return int(pltpu.get_tpu_info().vmem_capacity_bytes)
    except Exception:
        return 64 * 1024 * 1024            # v7x-safe fallback


def _is_v5():
    try:
        return "v5" in jax.devices()[0].device_kind.lower()
    except Exception:
        return False


def _largest_divisor_leq(n, cap):
    d = max(1, min(n, cap))
    while n % d:
        d -= 1
    return d


def _pick_cout_tile(C):
    """Lane-dense Cout tile: multiple of 128 (256 preferred off-v5e) or full C."""
    if C % 128 != 0:
        return C                            # full-C block satisfies the lane rule
    pref = 128 if _is_v5() else 256
    if C <= pref:
        return C
    return pref if C % pref == 0 else 128


# --------------------------------------------------------------------------- #
# Kernels
# --------------------------------------------------------------------------- #
def _conv_taps(e00_ref, e01_ref, e10_ref, e11_ref, h00_ref, h01_ref, wo, th):
    """Build the 9 (th, wo, Cin) tap views in ky*3+kx order."""
    p00, p01 = e00_ref[0], e01_ref[0]
    p10, p11 = e10_ref[0], e11_ref[0]
    # Row-parity-0 planes shifted down one row (ky == 2), using the halo row.
    if th > 1:
        p00s = jnp.concatenate([p00[1:], h00_ref[0]], axis=0)
        p01s = jnp.concatenate([p01[1:], h01_ref[0]], axis=0)
    else:
        p00s, p01s = h00_ref[0], h01_ref[0]
    return (p00[:, :wo], p01[:, :wo], p00[:, 1:wo + 1],
            p10[:, :wo], p11[:, :wo], p10[:, 1:wo + 1],
            p00s[:, :wo], p01s[:, :wo], p00s[:, 1:wo + 1])


def _conv3x3_s2_fused_kernel(e00_ref, e01_ref, e10_ref, e11_ref,
                             h00_ref, h01_ref, w_ref, b_ref, o_ref):
    """3x3/stride-2/pad-1 conv, one (batch, row-tile, cout-tile) block.

    e??_ref : (1, th, wo+1, Cin)   row-tile of parity plane (row%2, col%2)
    h0?_ref : (1, 1,  wo+1, Cin)   halo row (t+1)*th of the row-parity-0 planes
    w_ref   : (9*Cin, Cout_tile)   taps packed tap-major, cin-minor
    b_ref   : (1, Cout_tile)       float32
    o_ref   : (1, th, wo, Cout_tile)
    """
    _, th, wo, co = o_ref.shape
    ci = e00_ref.shape[-1]
    m = th * wo
    taps = _conv_taps(e00_ref, e01_ref, e10_ref, e11_ref, h00_ref, h01_ref, wo, th)
    # One K = 9*Cin MXU matmul instead of 9 narrow K=Cin dots.
    lhs = jnp.concatenate(taps, axis=-1).astype(w_ref.dtype).reshape(m, 9 * ci)
    acc = jnp.dot(lhs, w_ref[...], preferred_element_type=jnp.float32)
    acc = acc + b_ref[...].astype(jnp.float32)
    o_ref[0] = acc.reshape(th, wo, co).astype(o_ref.dtype)


def _conv3x3_s2_loop_kernel(e00_ref, e01_ref, e10_ref, e11_ref,
                            h00_ref, h01_ref, w_ref, b_ref, o_ref, acc_ref):
    """Fallback for large Cin: 9 accumulating dots into a VMEM scratch ref.

    w_ref : (9, Cin, Cout_tile);  acc_ref : (th*wo, Cout_tile) float32 scratch.
    """
    _, th, wo, co = o_ref.shape
    ci = e00_ref.shape[-1]
    m = th * wo
    taps = _conv_taps(e00_ref, e01_ref, e10_ref, e11_ref, h00_ref, h01_ref, wo, th)
    acc_ref[...] = jnp.broadcast_to(b_ref[...], (m, co)).astype(jnp.float32)
    for k in range(9):      # static unroll; ref-accumulate (MRB-friendly on v7x)
        acc_ref[...] += jnp.dot(taps[k].astype(w_ref.dtype).reshape(m, ci),
                                w_ref[k], preferred_element_type=jnp.float32)
    o_ref[0] = acc_ref[...].reshape(th, wo, co).astype(o_ref.dtype)


def _avg_pool2x2_kernel(x_ref, o_ref):
    """2x2/stride-2 average pool on one (batch, 2*th-row) NHWC block."""
    _, th, wo, c = o_ref.shape
    x = x_ref[0].astype(jnp.float32)               # (2*th, W, C)
    x = x.reshape(th, 2, 2 * wo, c)
    rows = x[:, 0] + x[:, 1]                       # vertical pair sum (th, W, C)
    rows = rows.reshape(th, wo, 2, c)
    o_ref[0] = (0.25 * (rows[:, :, 0] + rows[:, :, 1])).astype(o_ref.dtype)


# --------------------------------------------------------------------------- #
# Wrapper
# --------------------------------------------------------------------------- #
def _conv_downsample(xh, conv_w, conv_b, matmul_dtype, budget, fuse_override):
    B, H, W, C = xh.shape
    ho, wo = H // 2, W // 2
    dtype = xh.dtype
    isize = dtype.itemsize
    cdt = jnp.dtype(matmul_dtype) if matmul_dtype is not None else jnp.dtype(dtype)
    wsize = cdt.itemsize

    # Zero-pad once; 4 stride-2 parity planes (cheap XLA slices) so the kernel
    # only does contiguous loads.  Each plane: (B, ho+1, wo+1, C).
    xp = jnp.pad(xh, ((0, 0), (1, 1), (1, 1), (0, 0)))
    e00 = xp[:, 0::2, 0::2, :]
    e01 = xp[:, 0::2, 1::2, :]
    e10 = xp[:, 1::2, 0::2, :]
    e11 = xp[:, 1::2, 1::2, :]

    # PyTorch OIHW -> (9, Cin, Cout), tap-major; cast ONCE for the MXU.
    w_pack = jnp.transpose(conv_w, (2, 3, 1, 0)).reshape(9, C, C).astype(cdt)
    b_pack = conv_b.reshape(1, C).astype(jnp.float32)

    tco = _pick_cout_tile(C)
    n_co = C // tco
    fuse = (C <= 256) if fuse_override is None else bool(fuse_override)

    # ---- output-row tiling with a +1-row halo on the row-parity-0 planes ----
    def step_bytes(th):
        blocks = ((4 * th + 2) * (wo + 1) * C * isize      # planes + halo rows
                  + 9 * C * tco * wsize                     # weight tile
                  + tco * 4                                 # bias
                  + th * wo * tco * isize)                  # output tile
        if fuse:
            tmp = (2 * th * wo * 9 * C * wsize              # taps + fused operand
                   + th * wo * tco * 4                      # f32 matmul result
                   + 2 * th * (wo + 1) * C * isize)         # row-shifted planes
        else:
            tmp = (2 * th * wo * C * wsize
                   + th * wo * tco * 4
                   + 2 * th * (wo + 1) * C * isize)
        return 2 * blocks + tmp                             # 2x: double buffering

    th = ho
    while th > 1 and step_bytes(th) > budget:
        th = _largest_divisor_leq(ho, th - 1)
    n_rows = ho // th

    # ---- grid order: keep whichever operand is costlier to re-fetch resident --
    redundant_w = (B * n_rows - 1) * 9 * C * C * wsize if n_co > 1 else 0
    redundant_p = (n_co - 1) * B * n_rows * (4 * th + 2) * (wo + 1) * C * isize
    weights_outer = (n_co > 1) and (redundant_w > redundant_p)

    if weights_outer:
        grid = (n_co, B, n_rows)
        ix = lambda f: (lambda j, b, t: f(b, t, j))
    else:
        grid = (B, n_rows, n_co)
        ix = lambda f: (lambda b, t, j: f(b, t, j))

    plane_spec = pl.BlockSpec((1, th, wo + 1, C), ix(lambda b, t, j: (b, t, 0, 0)))
    halo_spec = pl.BlockSpec((1, 1, wo + 1, C),
                             ix(lambda b, t, j: (b, (t + 1) * th, 0, 0)))
    b_spec = pl.BlockSpec((1, tco), ix(lambda b, t, j: (0, j)))
    o_spec = pl.BlockSpec((1, th, wo, tco), ix(lambda b, t, j: (b, t, 0, j)))

    if fuse:
        kernel = _conv3x3_s2_fused_kernel
        w_arg = w_pack.reshape(9 * C, C)
        w_spec = pl.BlockSpec((9 * C, tco), ix(lambda b, t, j: (0, j)))
        scratch = []
    else:
        kernel = _conv3x3_s2_loop_kernel
        w_arg = w_pack
        w_spec = pl.BlockSpec((9, C, tco), ix(lambda b, t, j: (0, 0, j)))
        scratch = [pltpu.VMEM((th * wo, tco), jnp.float32)]

    return pl.pallas_call(
        kernel,
        out_shape=jax.ShapeDtypeStruct((B, ho, wo, C), dtype),
        grid=grid,
        in_specs=[plane_spec] * 4 + [halo_spec] * 2 + [w_spec, b_spec],
        out_specs=o_spec,
        scratch_shapes=scratch,
        compiler_params=pltpu.CompilerParams(
            dimension_semantics=("parallel", "parallel", "parallel"),
            vmem_limit_bytes=budget),
    )(e00, e01, e10, e11, e00, e01, w_arg, b_pack)


def _pool_downsample(xh, budget, capacity):
    B, H, W, C = xh.shape
    ho, wo = H // 2, W // 2
    dtype = xh.dtype
    isize = dtype.itemsize

    # Purely HBM-bound: no wrapper-side parity-plane materialization (that was
    # a full extra HBM read+write).  The kernel reads 2*th raw NHWC rows per
    # step and reduces on-chip; tile sized from the chip's VMEM capacity.
    target = min(budget, capacity // 4)

    def step_bytes(th):
        in_blk = 2 * th * W * C * isize
        out_blk = th * wo * C * isize
        tmp = 2 * th * W * C * 4 + th * wo * C * 4       # f32 temporaries
        return 2 * (in_blk + out_blk) + tmp

    th = ho
    while th > 1 and step_bytes(th) > target:
        th = _largest_divisor_leq(ho, th - 1)
    n_rows = ho // th

    return pl.pallas_call(
        _avg_pool2x2_kernel,
        out_shape=jax.ShapeDtypeStruct((B, ho, wo, C), dtype),
        grid=(B, n_rows),
        in_specs=[pl.BlockSpec((1, 2 * th, W, C), lambda b, t: (b, t, 0, 0))],
        out_specs=pl.BlockSpec((1, th, wo, C), lambda b, t: (b, t, 0, 0)),
        compiler_params=pltpu.CompilerParams(
            dimension_semantics=("parallel", "parallel"),
            vmem_limit_bytes=budget),
    )(xh)


def downsample(x, conv_w=None, conv_b=None, *, with_conv,
               matmul_dtype=None, fuse_taps=None, channels_last=False):
    """Forward pass of Downsample.

    x            : (B, C, H, W) NCHW (PyTorch layout), or (B, H, W, C) if
                   channels_last=True (skips both HBM transposes; output then
                   stays NHWC).
    matmul_dtype : optional operand dtype for the conv MXU matmul, e.g.
                   jnp.bfloat16 for the bf16-native MXU on v5e/v6e/v7x
                   (f32 accumulation is always used).  None keeps the input
                   dtype for bit-tight parity with the f32 PyTorch module.
    fuse_taps    : None = auto (fuse the 9 taps into one K=9*Cin matmul when
                   Cin <= 256); True/False forces the choice.
    """
    if channels_last:
        xh = x
        B, H, W, C = x.shape
    else:
        B, C, H, W = x.shape
        xh = jnp.transpose(x, (0, 2, 3, 1))            # channels on the lane dim
    assert H % 2 == 0 and W % 2 == 0, "even spatial dims expected"

    capacity = _vmem_capacity_bytes()
    budget = int(0.75 * capacity)                      # headroom for Mosaic scratch

    if with_conv:
        out = _conv_downsample(xh, conv_w, conv_b, matmul_dtype, budget, fuse_taps)
    else:
        out = _pool_downsample(xh, budget, capacity)

    if channels_last:
        return out
    return jnp.transpose(out, (0, 3, 1, 2))


# --------------------------------------------------------------------------- #
# Pure-JAX references matching the PyTorch forward
# --------------------------------------------------------------------------- #
def reference_conv(x, w, b):
    out = lax.conv_general_dilated(
        x, w, window_strides=(2, 2), padding=((1, 1), (1, 1)),
        dimension_numbers=("NCHW", "OIHW", "NCHW"))
    return out + b.reshape(1, -1, 1, 1)


def reference_conv_bf16(x, w, b):
    out = lax.conv_general_dilated(
        x.astype(jnp.bfloat16), w.astype(jnp.bfloat16),
        window_strides=(2, 2), padding=((1, 1), (1, 1)),
        dimension_numbers=("NCHW", "OIHW", "NCHW"),
        preferred_element_type=jnp.float32)
    return out + b.reshape(1, -1, 1, 1)


def reference_pool(x):
    B, C, H, W = x.shape
    return x.reshape(B, C, H // 2, 2, W // 2, 2).mean(axis=(3, 5))


# --------------------------------------------------------------------------- #
if __name__ == "__main__":
    B, C, H, W = 2, 64, 16, 16
    key = jax.random.PRNGKey(0)
    kx_, kw_, kb_ = jax.random.split(key, 3)
    x = jax.random.normal(kx_, (B, C, H, W), jnp.float32)
    w = 0.1 * jax.random.normal(kw_, (C, C, 3, 3), jnp.float32)
    b = 0.1 * jax.random.normal(kb_, (C,), jnp.float32)

    conv_f32 = jax.jit(lambda x_, w_, b_: downsample(x_, w_, b_, with_conv=True))
    conv_f32_loop = jax.jit(lambda x_, w_, b_: downsample(
        x_, w_, b_, with_conv=True, fuse_taps=False))
    conv_bf16 = jax.jit(lambda x_, w_, b_: downsample(
        x_, w_, b_, with_conv=True, matmul_dtype=jnp.bfloat16))
    pool_fn = jax.jit(lambda x_: downsample(x_, with_conv=False))

    y_fused = jax.block_until_ready(conv_f32(x, w, b))
    y_loop = jax.block_until_ready(conv_f32_loop(x, w, b))
    y_bf16 = jax.block_until_ready(conv_bf16(x, w, b))
    y_pool = jax.block_until_ready(pool_fn(x))

    r_f32 = reference_conv(x, w, b)
    r_bf16 = reference_conv_bf16(x, w, b)
    r_pool = reference_pool(x)

    assert y_fused.shape == (B, C, H // 2, W // 2) and y_fused.dtype == x.dtype
    assert y_pool.shape == (B, C, H // 2, W // 2) and y_pool.dtype == x.dtype
    assert jnp.allclose(y_fused, r_f32, rtol=1e-4, atol=1e-4), \
        float(jnp.max(jnp.abs(y_fused - r_f32)))
    assert jnp.allclose(y_loop, r_f32, rtol=1e-4, atol=1e-4), \
        float(jnp.max(jnp.abs(y_loop - r_f32)))
    assert jnp.allclose(y_bf16, r_bf16, rtol=5e-3, atol=5e-3), \
        float(jnp.max(jnp.abs(y_bf16 - r_bf16)))
    assert jnp.allclose(y_pool, r_pool, rtol=1e-4, atol=1e-4), \
        float(jnp.max(jnp.abs(y_pool - r_pool)))
    print("KERNEL_OK")
</pallas_src>

<mosaic_0001>
module attributes {stable_mosaic.version = 11 : i64} {
  func.func @_conv3x3_s2_fused_kernel(%arg0: i32, %arg1: i32, %arg2: i32, %arg3: memref<1x8x9x64xf32, #tpu.memory_space<vmem>>, %arg4: memref<1x8x9x64xf32, #tpu.memory_space<vmem>>, %arg5: memref<1x8x9x64xf32, #tpu.memory_space<vmem>>, %arg6: memref<1x8x9x64xf32, #tpu.memory_space<vmem>>, %arg7: memref<1x1x9x64xf32, #tpu.memory_space<vmem>>, %arg8: memref<1x1x9x64xf32, #tpu.memory_space<vmem>>, %arg9: memref<576x64xf32, #tpu.memory_space<vmem>>, %arg10: memref<1x64xf32, #tpu.memory_space<vmem>>, %arg11: memref<1x8x8x64xf32, #tpu.memory_space<vmem>>) attributes {dimension_semantics = [#tpu.dimension_semantics<parallel>, #tpu.dimension_semantics<parallel>, #tpu.dimension_semantics<parallel>], iteration_bounds = array<i64: 2, 1, 1>, scalar_prefetch = 0 : i64, scratch_operands = 0 : i64, tpu.core_type = #tpu.core_type<tc>, window_params = [{transform_indices = @transform_0, window_bounds = array<i64: 1, 8, 9, 64>}, {transform_indices = @transform_1, window_bounds = array<i64: 1, 8, 9, 64>}, {transform_indices = @transform_2, window_bounds = array<i64: 1, 8, 9, 64>}, {transform_indices = @transform_3, window_bounds = array<i64: 1, 8, 9, 64>}, {transform_indices = @transform_4, window_bounds = array<i64: 1, 1, 9, 64>}, {transform_indices = @transform_5, window_bounds = array<i64: 1, 1, 9, 64>}, {transform_indices = @transform_6, window_bounds = array<i64: 576, 64>}, {transform_indices = @transform_7, window_bounds = array<i64: 1, 64>}, {transform_indices = @transform_8, window_bounds = array<i64: 1, 8, 8, 64>}]} {
    %c0 = arith.constant 0 : index
    %c0_0 = arith.constant 0 : index
    %c0_1 = arith.constant 0 : index
    %c0_2 = arith.constant 0 : index
    %0 = vector.load %arg3[%c0, %c0_0, %c0_1, %c0_2] : memref<1x8x9x64xf32, #tpu.memory_space<vmem>>, vector<1x8x9x64xf32>
    %1 = vector.shape_cast %0 : vector<1x8x9x64xf32> to vector<8x9x64xf32>
    %c0_3 = arith.constant 0 : index
    %c0_4 = arith.constant 0 : index
    %c0_5 = arith.constant 0 : index
    %c0_6 = arith.constant 0 : index
    %2 = vector.load %arg4[%c0_3, %c0_4, %c0_5, %c0_6] : memref<1x8x9x64xf32, #tpu.memory_space<vmem>>, vector<1x8x9x64xf32>
    %3 = vector.shape_cast %2 : vector<1x8x9x64xf32> to vector<8x9x64xf32>
    %c0_7 = arith.constant 0 : index
    %c0_8 = arith.constant 0 : index
    %c0_9 = arith.constant 0 : index
    %c0_10 = arith.constant 0 : index
    %4 = vector.load %arg5[%c0_7, %c0_8, %c0_9, %c0_10] : memref<1x8x9x64xf32, #tpu.memory_space<vmem>>, vector<1x8x9x64xf32>
    %5 = vector.shape_cast %4 : vector<1x8x9x64xf32> to vector<8x9x64xf32>
    %c0_11 = arith.constant 0 : index
    %c0_12 = arith.constant 0 : index
    %c0_13 = arith.constant 0 : index
    %c0_14 = arith.constant 0 : index
    %6 = vector.load %arg6[%c0_11, %c0_12, %c0_13, %c0_14] : memref<1x8x9x64xf32, #tpu.memory_space<vmem>>, vector<1x8x9x64xf32>
    %7 = vector.shape_cast %6 : vector<1x8x9x64xf32> to vector<8x9x64xf32>
    %8 = vector.extract_strided_slice %1 {offsets = [1, 0, 0], sizes = [7, 9, 64], strides = [1, 1, 1]} : vector<8x9x64xf32> to vector<7x9x64xf32>
    %c0_15 = arith.constant 0 : index
    %c0_16 = arith.constant 0 : index
    %c0_17 = arith.constant 0 : index
    %c0_18 = arith.constant 0 : index
    %9 = vector.load %arg7[%c0_15, %c0_16, %c0_17, %c0_18] : memref<1x1x9x64xf32, #tpu.memory_space<vmem>>, vector<1x1x9x64xf32>
    %10 = vector.shape_cast %9 : vector<1x1x9x64xf32> to vector<1x9x64xf32>
    %11 = tpu.concatenate %8, %10 in 0 : vector<7x9x64xf32>, vector<1x9x64xf32> -> vector<8x9x64xf32>
    %12 = vector.extract_strided_slice %3 {offsets = [1, 0, 0], sizes = [7, 9, 64], strides = [1, 1, 1]} : vector<8x9x64xf32> to vector<7x9x64xf32>
    %c0_19 = arith.constant 0 : index
    %c0_20 = arith.constant 0 : index
    %c0_21 = arith.constant 0 : index
    %c0_22 = arith.constant 0 : index
    %13 = vector.load %arg8[%c0_19, %c0_20, %c0_21, %c0_22] : memref<1x1x9x64xf32, #tpu.memory_space<vmem>>, vector<1x1x9x64xf32>
    %14 = vector.shape_cast %13 : vector<1x1x9x64xf32> to vector<1x9x64xf32>
    %15 = tpu.concatenate %12, %14 in 0 : vector<7x9x64xf32>, vector<1x9x64xf32> -> vector<8x9x64xf32>
    %16 = vector.extract_strided_slice %1 {offsets = [0, 0, 0], sizes = [8, 8, 64], strides = [1, 1, 1]} : vector<8x9x64xf32> to vector<8x8x64xf32>
    %17 = vector.extract_strided_slice %3 {offsets = [0, 0, 0], sizes = [8, 8, 64], strides = [1, 1, 1]} : vector<8x9x64xf32> to vector<8x8x64xf32>
    %18 = vector.extract_strided_slice %1 {offsets = [0, 1, 0], sizes = [8, 8, 64], strides = [1, 1, 1]} : vector<8x9x64xf32> to vector<8x8x64xf32>
    %19 = vector.extract_strided_slice %5 {offsets = [0, 0, 0], sizes = [8, 8, 64], strides = [1, 1, 1]} : vector<8x9x64xf32> to vector<8x8x64xf32>
    %20 = vector.extract_strided_slice %7 {offsets = [0, 0, 0], sizes = [8, 8, 64], strides = [1, 1, 1]} : vector<8x9x64xf32> to vector<8x8x64xf32>
    %21 = vector.extract_strided_slice %5 {offsets = [0, 1, 0], sizes = [8, 8, 64], strides = [1, 1, 1]} : vector<8x9x64xf32> to vector<8x8x64xf32>
    %22 = vector.extract_strided_slice %11 {offsets = [0, 0, 0], sizes = [8, 8, 64], strides = [1, 1, 1]} : vector<8x9x64xf32> to vector<8x8x64xf32>
    %23 = vector.extract_strided_slice %15 {offsets = [0, 0, 0], sizes = [8, 8, 64], strides = [1, 1, 1]} : vector<8x9x64xf32> to vector<8x8x64xf32>
    %24 = vector.extract_strided_slice %11 {offsets = [0, 1, 0], sizes = [8, 8, 64], strides = [1, 1, 1]} : vector<8x9x64xf32> to vector<8x8x64xf32>
    %25 = tpu.concatenate %16, %17, %18, %19, %20, %21, %22, %23, %24 in 2 : vector<8x8x64xf32>, vector<8x8x64xf32>, vector<8x8x64xf32>, vector<8x8x64xf32>, vector<8x8x64xf32>, vector<8x8x64xf32>, vector<8x8x64xf32>, vector<8x8x64xf32>, vector<8x8x64xf32> -> vector<8x8x576xf32>
    %26 = vector.shape_cast %25 : vector<8x8x576xf32> to vector<64x576xf32>
    %c0_23 = arith.constant 0 : index
    %c0_24 = arith.constant 0 : index
    %27 = vector.load %arg9[%c0_23, %c0_24] : memref<576x64xf32, #tpu.memory_space<vmem>>, vector<576x64xf32>
    %cst = arith.constant dense<0.000000e+00> : vector<64x64xf32>
    %28 = tpu.matmul %26, %27, %cst {dimension_numbers = #tpu.dot_dimension_numbers<[1], [0], [0], [1], [0, 0, 1, 1], [], []>} : vector<64x576xf32>, vector<576x64xf32>, vector<64x64xf32> -> vector<64x64xf32>
    %c0_25 = arith.constant 0 : index
    %c0_26 = arith.constant 0 : index
    %29 = vector.load %arg10[%c0_25, %c0_26] : memref<1x64xf32, #tpu.memory_space<vmem>>, vector<1x64xf32>
    %30 = vector.broadcast %29 : vector<1x64xf32> to vector<64x64xf32>
    %31 = arith.addf %28, %30 : vector<64x64xf32>
    %32 = vector.shape_cast %31 : vector<64x64xf32> to vector<8x8x64xf32>
    %c0_27 = arith.constant 0 : index
    %c0_28 = arith.constant 0 : index
    %c0_29 = arith.constant 0 : index
    %c0_30 = arith.constant 0 : index
    %33 = vector.load %arg11[%c0_27, %c0_28, %c0_29, %c0_30] : memref<1x8x8x64xf32, #tpu.memory_space<vmem>>, vector<1x8x8x64xf32>
    %34 = vector.shape_cast %33 : vector<1x8x8x64xf32> to vector<8x8x64xf32>
    %35 = vector.shape_cast %32 : vector<8x8x64xf32> to vector<1x8x8x64xf32>
    tpu.vector_store %arg11[%c0_27, %c0_28, %c0_29, %c0_30], %35 {strides = array<i32>} : memref<1x8x8x64xf32, #tpu.memory_space<vmem>>, vector<1x8x8x64xf32>,
    return
  }
  func.func @transform_0(%arg0: i32, %arg1: i32, %arg2: i32) -> (i32, i32, i32, i32) {
    %c0_i32 = arith.constant 0 : i32
    %c0_i32_0 = arith.constant 0 : i32
    %c0_i32_1 = arith.constant 0 : i32
    return %arg0, %arg1, %c0_i32, %c0_i32_0 : i32, i32, i32, i32
  }
  func.func @transform_1(%arg0: i32, %arg1: i32, %arg2: i32) -> (i32, i32, i32, i32) {
    %c0_i32 = arith.constant 0 : i32
    %c0_i32_0 = arith.constant 0 : i32
    %c0_i32_1 = arith.constant 0 : i32
    return %arg0, %arg1, %c0_i32, %c0_i32_0 : i32, i32, i32, i32
  }
  func.func @transform_2(%arg0: i32, %arg1: i32, %arg2: i32) -> (i32, i32, i32, i32) {
    %c0_i32 = arith.constant 0 : i32
    %c0_i32_0 = arith.constant 0 : i32
    %c0_i32_1 = arith.constant 0 : i32
    return %arg0, %arg1, %c0_i32, %c0_i32_0 : i32, i32, i32, i32
  }
  func.func @transform_3(%arg0: i32, %arg1: i32, %arg2: i32) -> (i32, i32, i32, i32) {
    %c0_i32 = arith.constant 0 : i32
    %c0_i32_0 = arith.constant 0 : i32
    %c0_i32_1 = arith.constant 0 : i32
    return %arg0, %arg1, %c0_i32, %c0_i32_0 : i32, i32, i32, i32
  }
  func.func @transform_4(%arg0: i32, %arg1: i32, %arg2: i32) -> (i32, i32, i32, i32) {
    %c1_i32 = arith.constant 1 : i32
    %0 = arith.addi %arg1, %c1_i32 : i32
    %c8_i32 = arith.constant 8 : i32
    %1 = arith.muli %0, %c8_i32 : i32
    %c0_i32 = arith.constant 0 : i32
    %c0_i32_0 = arith.constant 0 : i32
    %c0_i32_1 = arith.constant 0 : i32
    return %arg0, %1, %c0_i32, %c0_i32_0 : i32, i32, i32, i32
  }
  func.func @transform_5(%arg0: i32, %arg1: i32, %arg2: i32) -> (i32, i32, i32, i32) {
    %c1_i32 = arith.constant 1 : i32
    %0 = arith.addi %arg1, %c1_i32 : i32
    %c8_i32 = arith.constant 8 : i32
    %1 = arith.muli %0, %c8_i32 : i32
    %c0_i32 = arith.constant 0 : i32
    %c0_i32_0 = arith.constant 0 : i32
    %c0_i32_1 = arith.constant 0 : i32
    return %arg0, %1, %c0_i32, %c0_i32_0 : i32, i32, i32, i32
  }
  func.func @transform_6(%arg0: i32, %arg1: i32, %arg2: i32) -> (i32, i32) {
    %c0_i32 = arith.constant 0 : i32
    %c0_i32_0 = arith.constant 0 : i32
    return %c0_i32, %arg2 : i32, i32
  }
  func.func @transform_7(%arg0: i32, %arg1: i32, %arg2: i32) -> (i32, i32) {
    %c0_i32 = arith.constant 0 : i32
    %c0_i32_0 = arith.constant 0 : i32
    return %c0_i32, %arg2 : i32, i32
  }
  func.func @transform_8(%arg0: i32, %arg1: i32, %arg2: i32) -> (i32, i32, i32, i32) {
    %c0_i32 = arith.constant 0 : i32
    %c0_i32_0 = arith.constant 0 : i32
    return %arg0, %arg1, %c0_i32, %arg2 : i32, i32, i32, i32
  }
}

</mosaic_0001>

<llo_original>
// kernel: _lambda_.1
$region0: #{_lambda_.1}
  #allocation0 [shape = 'u32[]', space=smem, size = 0x4, offset = 0x4, fixed_abs, tag = 'smem constant byte address 0x4 - core index']
  #allocation1 [shape = 'u32[144,128]{1,0:T(1,128)}', space=vmem, size = 0x12000, scoped, tag = 'internal scratch']
  %s0 = inlined_call_operand.vmem [shape: f32[2,9,9,64], index: 0, kind: input, shape index: {}, may-alias: {0,4}]
  %s1 = inlined_call_operand.vmem [shape: f32[2,9,9,64], index: 1, kind: input, shape index: {}, may-alias: {1,5}]
  %s2 = inlined_call_operand.vmem [shape: f32[2,9,9,64], index: 2, kind: input, shape index: {}]
  %s3 = inlined_call_operand.vmem [shape: f32[2,9,9,64], index: 3, kind: input, shape index: {}]
  %s4 = inlined_call_operand.vmem [shape: f32[2,9,9,64], index: 4, kind: input, shape index: {}, may-alias: {0,4}]
  %s5 = inlined_call_operand.vmem [shape: f32[2,9,9,64], index: 5, kind: input, shape index: {}, may-alias: {1,5}]
  %s6 = inlined_call_operand.vmem [shape: f32[576,64], index: 6, kind: input, shape index: {}]
  %s7 = inlined_call_operand.vmem [shape: f32[1,64], index: 7, kind: input, shape index: {}]
  %s8 = inlined_call_operand.hbm [shape: f32[2,8,8,64], index: 8, kind: output, shape index: {}]
  %s9 = sld [smem:[#allocation0]]
  $region65: #{_lambda_.1} parent=0
    _
  %s11 = ssub.s32 1, %s9
  %s12 = scalar_select 0, %s11, %s9
  $region1: #{_lambda_.1} parent=0
    #allocation2 [shape = 'u8[65536]{0}', space=vmem, size = 0x10000, scoped, tag = 'output window, operand 0']
    #allocation3 [shape = 's32[2]{0}', space=sflag, size = 0x8, scoped, tag = 'scoped memory for _lambda_.1']
    %13 = vsyncpa [#allocation3], 0
    %s14 = scalar_lea.sflag [#allocation3], 1
    %15 = vsyncpa %s14, 0
    loop: start=0, step=1, limit=4
    $region2: #{_lambda_.1} parent=1 // loop_pre_header
      _
    $region3: #{_lambda_.1} parent=1 // loop_header
      %s17 = sphi 0, %s21
      %p18 = scmp.ge.s32.totalorder %s17, 4
      %s24 = sphi 0, %s43
      %s25 = sphi 0, %s39
      %s26 = sphi 0, %s35
      %s27 = sphi 0, %s24
      %s28 = sphi 0, %s25
      %s29 = sphi 0, %s26
      %s30 = sphi 0, %s27
      %s31 = sphi 0, %s28
      %s32 = sphi 0, %s29
      %s48 = sphi 0, %s50
      %s51 = sphi 0, %s48
      %s52 = sphi 0, %s51
      %s68 = sphi 0, %s52
      %s76 = sphi 0, %s78
      %s79 = sphi 0, %s76
      %s80 = sphi 0, %s79
      %s96 = sphi 0, %s80
      %s104 = sphi 0, %s106
      %s107 = sphi 0, %s104
      %s108 = sphi 0, %s107
      %s124 = sphi 0, %s108
      %s132 = sphi 0, %s134
      %s135 = sphi 0, %s132
      %s136 = sphi 0, %s135
      %s152 = sphi 0, %s136
      %s164 = sphi 0, %s166
      %s167 = sphi 0, %s164
      %s168 = sphi 0, %s167
      %s184 = sphi 0, %s168
      %s196 = sphi 0, %s198
      %s199 = sphi 0, %s196
      %s200 = sphi 0, %s199
      %s216 = sphi 0, %s200
      %s222 = sphi 0, %s224
      %s225 = sphi 0, %s222
      %s226 = sphi 0, %s225
      %s242 = sphi 0, %s226
      %s248 = sphi 0, %s250
      %s251 = sphi 0, %s248
      %s252 = sphi 0, %s251
      %s268 = sphi 0, %s252
      %s278 = sphi 0, %s280
      %s281 = sphi 0, %s278
      %s282 = sphi 0, %s281
      %s298 = sphi 0, %s282
    $region4: #{_lambda_.1} parent=1 // loop_header_branch
      %20 = sbr.rel (%p18) target = $region8
    $region5: #{_lambda_.1} parent=1 // loop_body
      %s22 = ssub.s32 %s17, 1
      %s23 = ssub.s32 %s17, 2
      %s33 = sadd.s32 1, %s26
      %p34 = scmp.ge.s32.totalorder %s33, 1
      %s35 = scalar_select %p34, 0, %s33
      %s36 = sadd.s32 1, %s25
      %s37 = scalar_select %p34, %s36, %s25
      %p38 = scmp.ge.s32.totalorder %s37, 1
      %s39 = scalar_select %p38, 0, %s37
      %s40 = sadd.s32 1, %s24
      %s41 = scalar_select %p38, %s40, %s24
      %p42 = scmp.ge.s32.totalorder %s41, 2
      %s43 = scalar_select %p42, 0, %s41
      %s44 = ssub.s32 %s24, %s43
      %s45 = ssub.s32 %s25, %s39
      %s46 = sor.u32 %s44, %s45
      %p47 = scmp.eq.s32.totalorder %s46, 0
      %s49 = sadd.s32 %s48, 1
      %s50 = scalar_select %p47, %s48, %s49
      %p53 = pneg %p47
      %p54 = scmp.eq.s32.totalorder %s17, 1
      %p55 = por %p53, %p54
      %p56 = scmp.ne.s32.totalorder %s48, %s51
      %p57 = scmp.eq.s32.totalorder %s17, 0
      %p58 = por %p56, %p57
      %p59 = scmp.ne.s32.totalorder %s48, %s51
      %p60 = scmp.eq.s32.totalorder %s22, 1
      %p61 = por %p59, %p60
      %p62 = scmp.ne.s32.totalorder %s51, %s52
      %p63 = scmp.eq.s32.totalorder %s22, 0
      %p64 = por %p62, %p63
      %p65 = scmp.ne.s32.totalorder %s51, %s52
      %p66 = scmp.eq.s32.totalorder %s23, 1
      %p67 = por %p65, %p66
      %p69 = scmp.ne.s32.totalorder %s52, %s68
      %p70 = scmp.eq.s32.totalorder %s23, 0
      %p71 = por %p69, %p70
      %s72 = ssub.s32 %s24, %s43
      %s73 = ssub.s32 %s25, %s39
      %s74 = sor.u32 %s72, %s73
      %p75 = scmp.eq.s32.totalorder %s74, 0
      %s77 = sadd.s32 %s76, 1
      %s78 = scalar_select %p75, %s76, %s77
      %p81 = pneg %p75
      %p82 = scmp.eq.s32.totalorder %s17, 1
      %p83 = por %p81, %p82
      %p84 = scmp.ne.s32.totalorder %s76, %s79
      %p85 = scmp.eq.s32.totalorder %s17, 0
      %p86 = por %p84, %p85
      %p87 = scmp.ne.s32.totalorder %s76, %s79
      %p88 = scmp.eq.s32.totalorder %s22, 1
      %p89 = por %p87, %p88
      %p90 = scmp.ne.s32.totalorder %s79, %s80
      %p91 = scmp.eq.s32.totalorder %s22, 0
      %p92 = por %p90, %p91
      %p93 = scmp.ne.s32.totalorder %s79, %s80
      %p94 = scmp.eq.s32.totalorder %s23, 1
      %p95 = por %p93, %p94
      %p97 = scmp.ne.s32.totalorder %s80, %s96
      %p98 = scmp.eq.s32.totalorder %s23, 0
      %p99 = por %p97, %p98
      %s100 = ssub.s32 %s24, %s43
      %s101 = ssub.s32 %s25, %s39
      %s102 = sor.u32 %s100, %s101
      %p103 = scmp.eq.s32.totalorder %s102, 0
      %s105 = sadd.s32 %s104, 1
      %s106 = scalar_select %p103, %s104, %s105
      %p109 = pneg %p103
      %p110 = scmp.eq.s32.totalorder %s17, 1
      %p111 = por %p109, %p110
      %p112 = scmp.ne.s32.totalorder %s104, %s107
      %p113 = scmp.eq.s32.totalorder %s17, 0
      %p114 = por %p112, %p113
      %p115 = scmp.ne.s32.totalorder %s104, %s107
      %p116 = scmp.eq.s32.totalorder %s22, 1
      %p117 = por %p115, %p116
      %p118 = scmp.ne.s32.totalorder %s107, %s108
      %p119 = scmp.eq.s32.totalorder %s22, 0
      %p120 = por %p118, %p119
      %p121 = scmp.ne.s32.totalorder %s107, %s108
      %p122 = scmp.eq.s32.totalorder %s23, 1
      %p123 = por %p121, %p122
      %p125 = scmp.ne.s32.totalorder %s108, %s124
      %p126 = scmp.eq.s32.totalorder %s23, 0
      %p127 = por %p125, %p126
      %s128 = ssub.s32 %s24, %s43
      %s129 = ssub.s32 %s25, %s39
      %s130 = sor.u32 %s128, %s129
      %p131 = scmp.eq.s32.totalorder %s130, 0
      %s133 = sadd.s32 %s132, 1
      %s134 = scalar_select %p131, %s132, %s133
      %p137 = pneg %p131
      %p138 = scmp.eq.s32.totalorder %s17, 1
      %p139 = por %p137, %p138
      %p140 = scmp.ne.s32.totalorder %s132, %s135
      %p141 = scmp.eq.s32.totalorder %s17, 0
      %p142 = por %p140, %p141
      %p143 = scmp.ne.s32.totalorder %s132, %s135
      %p144 = scmp.eq.s32.totalorder %s22, 1
      %p145 = por %p143, %p144
      %p146 = scmp.ne.s32.totalorder %s135, %s136
      %p147 = scmp.eq.s32.totalorder %s22, 0
      %p148 = por %p146, %p147
      %p149 = scmp.ne.s32.totalorder %s135, %s136
      %p150 = scmp.eq.s32.totalorder %s23, 1
      %p151 = por %p149, %p150
      %p153 = scmp.ne.s32.totalorder %s136, %s152
      %p154 = scmp.eq.s32.totalorder %s23, 0
      %p155 = por %p153, %p154
      %s156 = sadd.s32 %s25, 1
      %s157 = smul.u32 %s156, 8
      %s158 = sadd.s32 %s39, 1
      %s159 = smul.u32 %s158, 8
      %s160 = ssub.s32 %s24, %s43
      %s161 = ssub.s32 %s157, %s159
      %s162 = sor.u32 %s160, %s161
      %p163 = scmp.eq.s32.totalorder %s162, 0
      %s165 = sadd.s32 %s164, 1
      %s166 = scalar_select %p163, %s164, %s165
      %p169 = pneg %p163
      %p170 = scmp.eq.s32.totalorder %s17, 1
      %p171 = por %p169, %p170
      %p172 = scmp.ne.s32.totalorder %s164, %s167
      %p173 = scmp.eq.s32.totalorder %s17, 0
      %p174 = por %p172, %p173
      %p175 = scmp.ne.s32.totalorder %s164, %s167
      %p176 = scmp.eq.s32.totalorder %s22, 1
      %p177 = por %p175, %p176
      %p178 = scmp.ne.s32.totalorder %s167, %s168
      %p179 = scmp.eq.s32.totalorder %s22, 0
      %p180 = por %p178, %p179
      %p181 = scmp.ne.s32.totalorder %s167, %s168
      %p182 = scmp.eq.s32.totalorder %s23, 1
      %p183 = por %p181, %p182
      %p185 = scmp.ne.s32.totalorder %s168, %s184
      %p186 = scmp.eq.s32.totalorder %s23, 0
      %p187 = por %p185, %p186
      %s188 = sadd.s32 %s25, 1
      %s189 = smul.u32 %s188, 8
      %s190 = sadd.s32 %s39, 1
      %s191 = smul.u32 %s190, 8
      %s192 = ssub.s32 %s24, %s43
      %s193 = ssub.s32 %s189, %s191
      %s194 = sor.u32 %s192, %s193
      %p195 = scmp.eq.s32.totalorder %s194, 0
      %s197 = sadd.s32 %s196, 1
      %s198 = scalar_select %p195, %s196, %s197
      %p201 = pneg %p195
      %p202 = scmp.eq.s32.totalorder %s17, 1
      %p203 = por %p201, %p202
      %p204 = scmp.ne.s32.totalorder %s196, %s199
      %p205 = scmp.eq.s32.totalorder %s17, 0
      %p206 = por %p204, %p205
      %p207 = scmp.ne.s32.totalorder %s196, %s199
      %p208 = scmp.eq.s32.totalorder %s22, 1
      %p209 = por %p207, %p208
      %p210 = scmp.ne.s32.totalorder %s199, %s200
      %p211 = scmp.eq.s32.totalorder %s22, 0
      %p212 = por %p210, %p211
      %p213 = scmp.ne.s32.totalorder %s199, %s200
      %p214 = scmp.eq.s32.totalorder %s23, 1
      %p215 = por %p213, %p214
      %p217 = scmp.ne.s32.totalorder %s200, %s216
      %p218 = scmp.eq.s32.totalorder %s23, 0
      %p219 = por %p217, %p218
      %s220 = ssub.s32 %s26, %s35
      %p221 = scmp.eq.s32.totalorder %s220, 0
      %s223 = sadd.s32 %s222, 1
      %s224 = scalar_select %p221, %s222, %s223
      %p227 = pneg %p221
      %p228 = scmp.eq.s32.totalorder %s17, 1
      %p229 = por %p227, %p228
      %p230 = scmp.ne.s32.totalorder %s222, %s225
      %p231 = scmp.eq.s32.totalorder %s17, 0
      %p232 = por %p230, %p231
      %p233 = scmp.ne.s32.totalorder %s222, %s225
      %p234 = scmp.eq.s32.totalorder %s22, 1
      %p235 = por %p233, %p234
      %p236 = scmp.ne.s32.totalorder %s225, %s226
      %p237 = scmp.eq.s32.totalorder %s22, 0
      %p238 = por %p236, %p237
      %p239 = scmp.ne.s32.totalorder %s225, %s226
      %p240 = scmp.eq.s32.totalorder %s23, 1
      %p241 = por %p239, %p240
      %p243 = scmp.ne.s32.totalorder %s226, %s242
      %p244 = scmp.eq.s32.totalorder %s23, 0
      %p245 = por %p243, %p244
      %s246 = ssub.s32 %s26, %s35
      %p247 = scmp.eq.s32.totalorder %s246, 0
      %s249 = sadd.s32 %s248, 1
      %s250 = scalar_select %p247, %s248, %s249
      %p253 = pneg %p247
      %p254 = scmp.eq.s32.totalorder %s17, 1
      %p255 = por %p253, %p254
      %p256 = scmp.ne.s32.totalorder %s248, %s251
      %p257 = scmp.eq.s32.totalorder %s17, 0
      %p258 = por %p256, %p257
      %p259 = scmp.ne.s32.totalorder %s248, %s251
      %p260 = scmp.eq.s32.totalorder %s22, 1
      %p261 = por %p259, %p260
      %p262 = scmp.ne.s32.totalorder %s251, %s252
      %p263 = scmp.eq.s32.totalorder %s22, 0
      %p264 = por %p262, %p263
      %p265 = scmp.ne.s32.totalorder %s251, %s252
      %p266 = scmp.eq.s32.totalorder %s23, 1
      %p267 = por %p265, %p266
      %p269 = scmp.ne.s32.totalorder %s252, %s268
      %p270 = scmp.eq.s32.totalorder %s23, 0
      %p271 = por %p269, %p270
      %s272 = ssub.s32 %s24, %s43
      %s273 = ssub.s32 %s25, %s39
      %s274 = sor.u32 %s272, %s273
      %s275 = ssub.s32 %s26, %s35
      %s276 = sor.u32 %s274, %s275
      %p277 = scmp.eq.s32.totalorder %s276, 0
      %s279 = sadd.s32 %s278, 1
      %s280 = scalar_select %p277, %s278, %s279
      %p283 = pneg %p277
      %p284 = scmp.eq.s32.totalorder %s17, 1
      %p285 = por %p283, %p284
      %p286 = scmp.ne.s32.totalorder %s278, %s281
      %p287 = scmp.eq.s32.totalorder %s17, 0
      %p288 = por %p286, %p287
      %p289 = scmp.ne.s32.totalorder %s278, %s281
      %p290 = scmp.eq.s32.totalorder %s22, 1
      %p291 = por %p289, %p290
      %p292 = scmp.ne.s32.totalorder %s281, %s282
      %p293 = scmp.eq.s32.totalorder %s22, 0
      %p294 = por %p292, %p293
      %p295 = scmp.ne.s32.totalorder %s281, %s282
      %p296 = scmp.eq.s32.totalorder %s23, 1
      %p297 = por %p295, %p296
      %p299 = scmp.ne.s32.totalorder %s282, %s298
      %p300 = scmp.eq.s32.totalorder %s23, 0
      %p301 = por %p299, %p300
      %p302 = scmp.le.s32.totalorder 1, %s17
      %p303 = scmp.lt.s32.totalorder %s17, 3
      %p304 = pnand %p302, %p303
      %p305 = pneg %p304
      // Predicated region
      $region9: #{_lambda_.1} parent=5 // pred_check
        _
      $region10: #{_lambda_.1} parent=5 // pred_check_branch
        %307 = sbr.rel (%p304) target = $region12
      $region11: #{_lambda_.1} parent=5 // pred_region
        %s308 = ssub.s32 %s17, 1
        // Predicated region
        $region13: #{_lambda_.1} parent=11 // pred_check
          %p309 = pneg %p238
        $region14: #{_lambda_.1} parent=11 // pred_check_branch
          %311 = sbr.rel (%p309) target = $region16
        $region15: #{_lambda_.1} parent=11 // pred_region
          %p312 = scmp.lt.s32.totalorder %s29, 0
          %s313 = scalar_select %p312, %s29, 0
          %s314 = smul.addr %s313, 8
          %s315 = scalar_lea.vmem %s6, %s314
        $region16: #{_lambda_.1} parent=11 // pred_fallthru
          _
        // Predicated region
        $region17: #{_lambda_.1} parent=11 // pred_check
          %p316 = pneg %p264
        $region18: #{_lambda_.1} parent=11 // pred_check_branch
          %318 = sbr.rel (%p316) target = $region20
        $region19: #{_lambda_.1} parent=11 // pred_region
          %p319 = scmp.lt.s32.totalorder %s29, 0
          %s320 = scalar_select %p319, %s29, 0
          %s321 = scalar_lea.vmem %s7, %s320
        $region20: #{_lambda_.1} parent=11 // pred_fallthru
          _
      $region12: #{_lambda_.1} parent=5 // pred_fallthru
        _
      %p322 = scmp.lt.s32.totalorder %s17, 2
      // Predicated region
      $region21: #{_lambda_.1} parent=5 // pred_check
        %p323 = pneg %p322
      $region22: #{_lambda_.1} parent=5 // pred_check_branch
        %325 = sbr.rel (%p323) target = $region24
      $region23: #{_lambda_.1} parent=5 // pred_region
        // Predicated region
        $region25: #{_lambda_.1} parent=23 // pred_check
          %p326 = pneg %p58
        $region26: #{_lambda_.1} parent=23 // pred_check_branch
          %328 = sbr.rel (%p326) target = $region28
        $region27: #{_lambda_.1} parent=23 // pred_region
          %s329 = smul.u32 8, %s25
          %s330 = ssub.s32 9, %s329
          %p331 = scmp.lt.s32.totalorder %s330, 8
          %s332 = scalar_select %p331, %s330, 8
          %s333 = smul.u32 128, %s332
          %s334 = smul.u32 %s333, 2
          %p335 = scmp.lt.s32.totalorder %s24, 1
          %s336 = scalar_select %p335, %s24, 1
          %p337 = scmp.lt.s32.totalorder %s329, 8
          %s338 = scalar_select %p337, %s329, 8
          %s339 = smul.addr %s338, 2
          %s340 = smul.addr %s336, 18
          %s341 = sadd.s32 %s339, %s340
          %s342 = smul.addr %s341, 8
          %s343 = scalar_lea.vmem %s0, %s342
          %s344 = smul.u32 8, %s25
          %s345 = ssub.s32 9, %s344
          %p346 = scmp.lt.s32.totalorder %s345, 8
          %s347 = scalar_select %p346, %s345, 8
          %s348 = smul.u32 128, %s347
          %s349 = smul.u32 %s348, 2
        $region28: #{_lambda_.1} parent=23 // pred_fallthru
          _
        // Predicated region
        $region29: #{_lambda_.1} parent=23 // pred_check
          %p350 = pneg %p86
        $region30: #{_lambda_.1} parent=23 // pred_check_branch
          %352 = sbr.rel (%p350) target = $region32
        $region31: #{_lambda_.1} parent=23 // pred_region
          %s353 = smul.u32 8, %s25
          %s354 = ssub.s32 9, %s353
          %p355 = scmp.lt.s32.totalorder %s354, 8
          %s356 = scalar_select %p355, %s354, 8
          %s357 = smul.u32 128, %s356
          %s358 = smul.u32 %s357, 2
          %p359 = scmp.lt.s32.totalorder %s24, 1
          %s360 = scalar_select %p359, %s24, 1
          %p361 = scmp.lt.s32.totalorder %s353, 8
          %s362 = scalar_select %p361, %s353, 8
          %s363 = smul.addr %s362, 2
          %s364 = smul.addr %s360, 18
          %s365 = sadd.s32 %s363, %s364
          %s366 = smul.addr %s365, 8
          %s367 = scalar_lea.vmem %s1, %s366
          %s368 = smul.u32 8, %s25
          %s369 = ssub.s32 9, %s368
          %p370 = scmp.lt.s32.totalorder %s369, 8
          %s371 = scalar_select %p370, %s369, 8
          %s372 = smul.u32 128, %s371
          %s373 = smul.u32 %s372, 2
        $region32: #{_lambda_.1} parent=23 // pred_fallthru
          _
        // Predicated region
        $region33: #{_lambda_.1} parent=23 // pred_check
          %p374 = pneg %p114
        $region34: #{_lambda_.1} parent=23 // pred_check_branch
          %376 = sbr.rel (%p374) target = $region36
        $region35: #{_lambda_.1} parent=23 // pred_region
          %s377 = smul.u32 8, %s25
          %s378 = ssub.s32 9, %s377
          %p379 = scmp.lt.s32.totalorder %s378, 8
          %s380 = scalar_select %p379, %s378, 8
          %s381 = smul.u32 128, %s380
          %s382 = smul.u32 %s381, 2
          %p383 = scmp.lt.s32.totalorder %s24, 1
          %s384 = scalar_select %p383, %s24, 1
          %p385 = scmp.lt.s32.totalorder %s377, 8
          %s386 = scalar_select %p385, %s377, 8
          %s387 = smul.addr %s386, 2
          %s388 = smul.addr %s384, 18
          %s389 = sadd.s32 %s387, %s388
          %s390 = smul.addr %s389, 8
          %s391 = scalar_lea.vmem %s2, %s390
          %s392 = smul.u32 8, %s25
          %s393 = ssub.s32 9, %s392
          %p394 = scmp.lt.s32.totalorder %s393, 8
          %s395 = scalar_select %p394, %s393, 8
          %s396 = smul.u32 128, %s395
          %s397 = smul.u32 %s396, 2
        $region36: #{_lambda_.1} parent=23 // pred_fallthru
          _
        // Predicated region
        $region37: #{_lambda_.1} parent=23 // pred_check
          %p398 = pneg %p142
        $region38: #{_lambda_.1} parent=23 // pred_check_branch
          %400 = sbr.rel (%p398) target = $region40
        $region39: #{_lambda_.1} parent=23 // pred_region
          %s401 = smul.u32 8, %s25
          %s402 = ssub.s32 9, %s401
          %p403 = scmp.lt.s32.totalorder %s402, 8
          %s404 = scalar_select %p403, %s402, 8
          %s405 = smul.u32 128, %s404
          %s406 = smul.u32 %s405, 2
          %p407 = scmp.lt.s32.totalorder %s24, 1
          %s408 = scalar_select %p407, %s24, 1
          %p409 = scmp.lt.s32.totalorder %s401, 8
          %s410 = scalar_select %p409, %s401, 8
          %s411 = smul.addr %s410, 2
          %s412 = smul.addr %s408, 18
          %s413 = sadd.s32 %s411, %s412
          %s414 = smul.addr %s413, 8
          %s415 = scalar_lea.vmem %s3, %s414
          %s416 = smul.u32 8, %s25
          %s417 = ssub.s32 9, %s416
          %p418 = scmp.lt.s32.totalorder %s417, 8
          %s419 = scalar_select %p418, %s417, 8
          %s420 = smul.u32 128, %s419
          %s421 = smul.u32 %s420, 2
        $region40: #{_lambda_.1} parent=23 // pred_fallthru
          _
        // Predicated region
        $region41: #{_lambda_.1} parent=23 // pred_check
          %p422 = pneg %p174
        $region42: #{_lambda_.1} parent=23 // pred_check_branch
          %424 = sbr.rel (%p422) target = $region44
        $region43: #{_lambda_.1} parent=23 // pred_region
          %s425 = sadd.s32 %s25, 1
          %s426 = smul.u32 %s425, 8
          %p427 = scmp.lt.s32.totalorder %s24, 1
          %s428 = scalar_select %p427, %s24, 1
          %p429 = scmp.lt.s32.totalorder %s426, 8
          %s430 = scalar_select %p429, %s426, 8
          %s431 = smul.addr %s430, 2
          %s432 = smul.addr %s428, 18
          %s433 = sadd.s32 %s431, %s432
          %s434 = smul.addr %s433, 8
          %s435 = scalar_lea.vmem %s4, %s434
          %s436 = sadd.s32 %s25, 1
          %s437 = smul.u32 %s436, 8
        $region44: #{_lambda_.1} parent=23 // pred_fallthru
          _
        // Predicated region
        $region45: #{_lambda_.1} parent=23 // pred_check
          %p438 = pneg %p206
        $region46: #{_lambda_.1} parent=23 // pred_check_branch
          %440 = sbr.rel (%p438) target = $region48
        $region47: #{_lambda_.1} parent=23 // pred_region
          %s441 = sadd.s32 %s25, 1
          %s442 = smul.u32 %s441, 8
          %p443 = scmp.lt.s32.totalorder %s24, 1
          %s444 = scalar_select %p443, %s24, 1
          %p445 = scmp.lt.s32.totalorder %s442, 8
          %s446 = scalar_select %p445, %s442, 8
          %s447 = smul.addr %s446, 2
          %s448 = smul.addr %s444, 18
          %s449 = sadd.s32 %s447, %s448
          %s450 = smul.addr %s449, 8
          %s451 = scalar_lea.vmem %s5, %s450
          %s452 = sadd.s32 %s25, 1
          %s453 = smul.u32 %s452, 8
        $region48: #{_lambda_.1} parent=23 // pred_fallthru
          _
      $region24: #{_lambda_.1} parent=5 // pred_fallthru
        _
      %p454 = scmp.le.s32.totalorder 1, %s17
      %p455 = scmp.lt.s32.totalorder %s17, 3
      %p456 = pnand %p454, %p455
      %p457 = pneg %p456
      // Predicated region
      $region49: #{_lambda_.1} parent=5 // pred_check
        _
      $region50: #{_lambda_.1} parent=5 // pred_check_branch
        %459 = sbr.rel (%p456) target = $region52
      $region51: #{_lambda_.1} parent=5 // pred_region
        %s460 = ssub.s32 %s17, 1
        %s461 = smul.u32 8, %s28
        %s462 = ssub.s32 9, %s461
        %p463 = scmp.lt.s32.totalorder %s462, 8
        %s464 = scalar_select %p463, %s462, 8
        %s465 = smul.u32 128, %s464
        %s466 = smul.u32 %s465, 2
        %p467 = scmp.lt.s32.totalorder %s27, 1
        %s468 = scalar_select %p467, %s27, 1
        %p469 = scmp.lt.s32.totalorder %s461, 8
        %s470 = scalar_select %p469, %s461, 8
        %s471 = smul.addr %s470, 2
        %s472 = smul.addr %s468, 18
        %s473 = sadd.s32 %s471, %s472
        %s474 = smul.addr %s473, 8
        %s475 = scalar_lea.vmem %s0, %s474
        %p476 = pneg %p64
        %p477 = pneg %p61
        %s478 = smul.u32 8, %s28
        %s479 = ssub.s32 9, %s478
        %p480 = scmp.lt.s32.totalorder %s479, 8
        %s481 = scalar_select %p480, %s479, 8
        %s482 = smul.u32 128, %s481
        %s483 = smul.u32 %s482, 2
        %p484 = scmp.lt.s32.totalorder %s27, 1
        %s485 = scalar_select %p484, %s27, 1
        %p486 = scmp.lt.s32.totalorder %s478, 8
        %s487 = scalar_select %p486, %s478, 8
        %s488 = smul.addr %s487, 2
        %s489 = smul.addr %s485, 18
        %s490 = sadd.s32 %s488, %s489
        %s491 = smul.addr %s490, 8
        %s492 = scalar_lea.vmem %s1, %s491
        %p493 = pneg %p92
        %p494 = pneg %p89
        %s495 = smul.u32 8, %s28
        %s496 = ssub.s32 9, %s495
        %p497 = scmp.lt.s32.totalorder %s496, 8
        %s498 = scalar_select %p497, %s496, 8
        %s499 = smul.u32 128, %s498
        %s500 = smul.u32 %s499, 2
        %p501 = scmp.lt.s32.totalorder %s27, 1
        %s502 = scalar_select %p501, %s27, 1
        %p503 = scmp.lt.s32.totalorder %s495, 8
        %s504 = scalar_select %p503, %s495, 8
        %s505 = smul.addr %s504, 2
        %s506 = smul.addr %s502, 18
        %s507 = sadd.s32 %s505, %s506
        %s508 = smul.addr %s507, 8
        %s509 = scalar_lea.vmem %s2, %s508
        %p510 = pneg %p120
        %p511 = pneg %p117
        %s512 = smul.u32 8, %s28
        %s513 = ssub.s32 9, %s512
        %p514 = scmp.lt.s32.totalorder %s513, 8
        %s515 = scalar_select %p514, %s513, 8
        %s516 = smul.u32 128, %s515
        %s517 = smul.u32 %s516, 2
        %p518 = scmp.lt.s32.totalorder %s27, 1
        %s519 = scalar_select %p518, %s27, 1
        %p520 = scmp.lt.s32.totalorder %s512, 8
        %s521 = scalar_select %p520, %s512, 8
        %s522 = smul.addr %s521, 2
        %s523 = smul.addr %s519, 18
        %s524 = sadd.s32 %s522, %s523
        %s525 = smul.addr %s524, 8
        %s526 = scalar_lea.vmem %s3, %s525
        %p527 = pneg %p148
        %p528 = pneg %p145
        %s529 = sadd.s32 %s28, 1
        %s530 = smul.u32 %s529, 8
        %p531 = scmp.lt.s32.totalorder %s27, 1
        %s532 = scalar_select %p531, %s27, 1
        %p533 = scmp.lt.s32.totalorder %s530, 8
        %s534 = scalar_select %p533, %s530, 8
        %s535 = smul.addr %s534, 2
        %s536 = smul.addr %s532, 18
        %s537 = sadd.s32 %s535, %s536
        %s538 = smul.addr %s537, 8
        %s539 = scalar_lea.vmem %s4, %s538
        %p540 = pneg %p180
        %p541 = pneg %p177
        %s542 = sadd.s32 %s28, 1
        %s543 = smul.u32 %s542, 8
        %p544 = scmp.lt.s32.totalorder %s27, 1
        %s545 = scalar_select %p544, %s27, 1
        %p546 = scmp.lt.s32.totalorder %s543, 8
        %s547 = scalar_select %p546, %s543, 8
        %s548 = smul.addr %s547, 2
        %s549 = smul.addr %s545, 18
        %s550 = sadd.s32 %s548, %s549
        %s551 = smul.addr %s550, 8
        %s552 = scalar_lea.vmem %s5, %s551
        %p553 = pneg %p212
        %p554 = pneg %p209
        %p555 = scmp.lt.s32.totalorder %s29, 0
        %s556 = scalar_select %p555, %s29, 0
        %s557 = smul.addr %s556, 8
        %s558 = scalar_lea.vmem %s6, %s557
        %p559 = pneg %p238
        %p560 = pneg %p235
        %p561 = scmp.lt.s32.totalorder %s29, 0
        %s562 = scalar_select %p561, %s29, 0
        %s563 = scalar_lea.vmem %s7, %s562
        %p564 = pneg %p264
        %p565 = pneg %p261
        %p566 = pneg %p294
        %p567 = pneg %p291
        %s568 = sand.u32 %s281, 1
        %s569 = scalar_lea.sflag [#allocation3], %s568
        %s570 = sand.u32 %s281, 1
        %s571 = smul.addr %s570, 64
        %s572 = scalar_lea.vmem [#allocation2], %s571
        %s573 = smul.u32 8, %s28
        %s574 = ssub.s32 9, %s573
        %p575 = scmp.lt.s32.totalorder %s574, 8
        %s576 = scalar_select %p575, %s574, 8
        %s577 = smul.u32 128, %s576
        %s578 = smul.u32 %s577, 2
        %p579 = scmp.lt.s32.totalorder %s27, 1
        %s580 = scalar_select %p579, %s27, 1
        %p581 = scmp.lt.s32.totalorder %s573, 8
        %s582 = scalar_select %p581, %s573, 8
        %s583 = smul.addr %s582, 2
        %s584 = smul.addr %s580, 18
        %s585 = sadd.s32 %s583, %s584
        %s586 = smul.addr %s585, 8
        %s587 = scalar_lea.vmem %s0, %s586
        %s588 = smul.u32 8, %s28
        %s589 = ssub.s32 9, %s588
        %p590 = scmp.lt.s32.totalorder %s589, 8
        %s591 = scalar_select %p590, %s589, 8
        %s592 = smul.u32 128, %s591
        %s593 = smul.u32 %s592, 2
        %s594 = smul.u32 8, %s28
        %s595 = ssub.s32 9, %s594
        %p596 = scmp.lt.s32.totalorder %s595, 8
        %s597 = scalar_select %p596, %s595, 8
        %s598 = smul.u32 128, %s597
        %s599 = smul.u32 %s598, 2
        %p600 = scmp.lt.s32.totalorder %s27, 1
        %s601 = scalar_select %p600, %s27, 1
        %p602 = scmp.lt.s32.totalorder %s594, 8
        %s603 = scalar_select %p602, %s594, 8
        %s604 = smul.addr %s603, 2
        %s605 = smul.addr %s601, 18
        %s606 = sadd.s32 %s604, %s605
        %s607 = smul.addr %s606, 8
        %s608 = scalar_lea.vmem %s1, %s607
        %s609 = smul.u32 8, %s28
        %s610 = ssub.s32 9, %s609
        %p611 = scmp.lt.s32.totalorder %s610, 8
        %s612 = scalar_select %p611, %s610, 8
        %s613 = smul.u32 128, %s612
        %s614 = smul.u32 %s613, 2
        %s615 = smul.u32 8, %s28
        %s616 = ssub.s32 9, %s615
        %p617 = scmp.lt.s32.totalorder %s616, 8
        %s618 = scalar_select %p617, %s616, 8
        %s619 = smul.u32 128, %s618
        %s620 = smul.u32 %s619, 2
        %p621 = scmp.lt.s32.totalorder %s27, 1
        %s622 = scalar_select %p621, %s27, 1
        %p623 = scmp.lt.s32.totalorder %s615, 8
        %s624 = scalar_select %p623, %s615, 8
        %s625 = smul.addr %s624, 2
        %s626 = smul.addr %s622, 18
        %s627 = sadd.s32 %s625, %s626
        %s628 = smul.addr %s627, 8
        %s629 = scalar_lea.vmem %s2, %s628
        %s630 = smul.u32 8, %s28
        %s631 = ssub.s32 9, %s630
        %p632 = scmp.lt.s32.totalorder %s631, 8
        %s633 = scalar_select %p632, %s631, 8
        %s634 = smul.u32 128, %s633
        %s635 = smul.u32 %s634, 2
        %s636 = smul.u32 8, %s28
        %s637 = ssub.s32 9, %s636
        %p638 = scmp.lt.s32.totalorder %s637, 8
        %s639 = scalar_select %p638, %s637, 8
        %s640 = smul.u32 128, %s639
        %s641 = smul.u32 %s640, 2
        %p642 = scmp.lt.s32.totalorder %s27, 1
        %s643 = scalar_select %p642, %s27, 1
        %p644 = scmp.lt.s32.totalorder %s636, 8
        %s645 = scalar_select %p644, %s636, 8
        %s646 = smul.addr %s645, 2
        %s647 = smul.addr %s643, 18
        %s648 = sadd.s32 %s646, %s647
        %s649 = smul.addr %s648, 8
        %s650 = scalar_lea.vmem %s3, %s649
        %s651 = smul.u32 8, %s28
        %s652 = ssub.s32 9, %s651
        %p653 = scmp.lt.s32.totalorder %s652, 8
        %s654 = scalar_select %p653, %s652, 8
        %s655 = smul.u32 128, %s654
        %s656 = smul.u32 %s655, 2
        %s657 = sadd.s32 %s28, 1
        %s658 = smul.u32 %s657, 8
        %p659 = scmp.lt.s32.totalorder %s27, 1
        %s660 = scalar_select %p659, %s27, 1
        %p661 = scmp.lt.s32.totalorder %s658, 8
        %s662 = scalar_select %p661, %s658, 8
        %s663 = smul.addr %s662, 2
        %s664 = smul.addr %s660, 18
        %s665 = sadd.s32 %s663, %s664
        %s666 = smul.addr %s665, 8
        %s667 = scalar_lea.vmem %s4, %s666
        %s668 = sadd.s32 %s28, 1
        %s669 = smul.u32 %s668, 8
        %s670 = sadd.s32 %s28, 1
        %s671 = smul.u32 %s670, 8
        %p672 = scmp.lt.s32.totalorder %s27, 1
        %s673 = scalar_select %p672, %s27, 1
        %p674 = scmp.lt.s32.totalorder %s671, 8
        %s675 = scalar_select %p674, %s671, 8
        %s676 = smul.addr %s675, 2
        %s677 = smul.addr %s673, 18
        %s678 = sadd.s32 %s676, %s677
        %s679 = smul.addr %s678, 8
        %s680 = scalar_lea.vmem %s5, %s679
        %s681 = sadd.s32 %s28, 1
        %s682 = smul.u32 %s681, 8
        %p683 = scmp.lt.s32.totalorder %s29, 0
        %s684 = scalar_select %p683, %s29, 0
        %s685 = smul.addr %s684, 8
        %s686 = scalar_lea.vmem %s6, %s685
        %p687 = scmp.lt.s32.totalorder %s29, 0
        %s688 = scalar_select %p687, %s29, 0
        %s689 = scalar_lea.vmem %s7, %s688
        %s690 = smul.u32 8, %s28
        %v691 = vld [vmem:[%s587] sm:$0xff]
        %v692 = vld [vmem:[%s587 + $0x8] sm:$0x1]
        %v693 = vld [vmem:[%s587 + $0x10] sm:$0xff]
        %v694 = vld [vmem:[%s587 + $0x18] sm:$0x1]
        %v695 = vld [vmem:[%s587 + $0x20] sm:$0xff]
        %v696 = vld [vmem:[%s587 + $0x28] sm:$0x1]
        %v697 = vld [vmem:[%s587 + $0x30] sm:$0xff]
        %v698 = vld [vmem:[%s587 + $0x38] sm:$0x1]
        %v699 = vld [vmem:[%s587 + $0x40] sm:$0xff]
        %v700 = vld [vmem:[%s587 + $0x48] sm:$0x1]
        %v701 = vld [vmem:[%s587 + $0x50] sm:$0xff]
        %v702 = vld [vmem:[%s587 + $0x58] sm:$0x1]
        %v703 = vld [vmem:[%s587 + $0x60] sm:$0xff]
        %v704 = vld [vmem:[%s587 + $0x68] sm:$0x1]
        %v705 = vld [vmem:[%s587 + $0x70] sm:$0xff]
        %v706 = vld [vmem:[%s587 + $0x78] sm:$0x1]
        %v707 = vld [vmem:[%s608] sm:$0xff]
        %v708 = vld [vmem:[%s608 + $0x10] sm:$0xff]
        %v709 = vld [vmem:[%s608 + $0x20] sm:$0xff]
        %v710 = vld [vmem:[%s608 + $0x30] sm:$0xff]
        %v711 = vld [vmem:[%s608 + $0x40] sm:$0xff]
        %v712 = vld [vmem:[%s608 + $0x50] sm:$0xff]
        %v713 = vld [vmem:[%s608 + $0x60] sm:$0xff]
        %v714 = vld [vmem:[%s608 + $0x70] sm:$0xff]
        %v715 = vld [vmem:[%s629] sm:$0xff]
        %v716 = vld [vmem:[%s629 + $0x8] sm:$0x1]
        %v717 = vld [vmem:[%s629 + $0x10] sm:$0xff]
        %v718 = vld [vmem:[%s629 + $0x18] sm:$0x1]
        %v719 = vld [vmem:[%s629 + $0x20] sm:$0xff]
        %v720 = vld [vmem:[%s629 + $0x28] sm:$0x1]
        %v721 = vld [vmem:[%s629 + $0x30] sm:$0xff]
        %v722 = vld [vmem:[%s629 + $0x38] sm:$0x1]
        %v723 = vld [vmem:[%s629 + $0x40] sm:$0xff]
        %v724 = vld [vmem:[%s629 + $0x48] sm:$0x1]
        %v725 = vld [vmem:[%s629 + $0x50] sm:$0xff]
        %v726 = vld [vmem:[%s629 + $0x58] sm:$0x1]
        %v727 = vld [vmem:[%s629 + $0x60] sm:$0xff]
        %v728 = vld [vmem:[%s629 + $0x68] sm:$0x1]
        %v729 = vld [vmem:[%s629 + $0x70] sm:$0xff]
        %v730 = vld [vmem:[%s629 + $0x78] sm:$0x1]
        %v731 = vld [vmem:[%s650] sm:$0xff]
        %v732 = vld [vmem:[%s650 + $0x10] sm:$0xff]
        %v733 = vld [vmem:[%s650 + $0x20] sm:$0xff]
        %v734 = vld [vmem:[%s650 + $0x30] sm:$0xff]
        %v735 = vld [vmem:[%s650 + $0x40] sm:$0xff]
        %v736 = vld [vmem:[%s650 + $0x50] sm:$0xff]
        %v737 = vld [vmem:[%s650 + $0x60] sm:$0xff]
        %v738 = vld [vmem:[%s650 + $0x70] sm:$0xff]
        %v739 = vld [vmem:[%s667] sm:$0xff]
        %v740 = vld [vmem:[%s667 + $0x8] sm:$0x1]
        %v741 = vld [vmem:[%s680] sm:$0xff]
        %750 = vrot.lane.b32.xlu0 %v707, 64
        %v751 = vpop.permute.xlu0 %750
        %752 = vrot.lane.b32.xlu0 %v708, 64
        %v753 = vpop.permute.xlu0 %752
        %754 = vrot.lane.b32.xlu0 %v709, 64
        %v755 = vpop.permute.xlu0 %754
        %756 = vrot.lane.b32.xlu0 %v710, 64
        %v757 = vpop.permute.xlu0 %756
        %758 = vrot.lane.b32.xlu0 %v711, 64
        %v759 = vpop.permute.xlu0 %758
        %760 = vrot.lane.b32.xlu0 %v712, 64
        %v761 = vpop.permute.xlu0 %760
        %762 = vrot.lane.b32.xlu0 %v713, 64
        %v763 = vpop.permute.xlu0 %762
        %764 = vrot.lane.b32.xlu0 %v714, 64
        %v765 = vpop.permute.xlu0 %764
        %vm790 = vcmask 1046528
        %v791 = vrot.slane %v691, 1
        %v792 = vrot.slane %v692, 1
        %v793 = vsel %vm790, %v791, %v792
        %v794 = vrot.slane %v693, 1
        %v795 = vrot.slane %v694, 1
        %v796 = vsel %vm790, %v794, %v795
        %v797 = vrot.slane %v695, 1
        %v798 = vrot.slane %v696, 1
        %v799 = vsel %vm790, %v797, %v798
        %v800 = vrot.slane %v697, 1
        %v801 = vrot.slane %v698, 1
        %v802 = vsel %vm790, %v800, %v801
        %v803 = vrot.slane %v699, 1
        %v804 = vrot.slane %v700, 1
        %v805 = vsel %vm790, %v803, %v804
        %v806 = vrot.slane %v701, 1
        %v807 = vrot.slane %v702, 1
        %v808 = vsel %vm790, %v806, %v807
        %v809 = vrot.slane %v703, 1
        %v810 = vrot.slane %v704, 1
        %v811 = vsel %vm790, %v809, %v810
        %v812 = vrot.slane %v705, 1
        %v813 = vrot.slane %v706, 1
        %v814 = vsel %vm790, %v812, %v813
        %831 = vrot.lane.b32.xlu0 %v715, 64
        %v832 = vpop.permute.xlu0 %831
        %833 = vrot.lane.b32.xlu0 %v717, 64
        %v834 = vpop.permute.xlu0 %833
        %835 = vrot.lane.b32.xlu0 %v719, 64
        %v836 = vpop.permute.xlu0 %835
        %837 = vrot.lane.b32.xlu0 %v721, 64
        %v838 = vpop.permute.xlu0 %837
        %839 = vrot.lane.b32.xlu0 %v723, 64
        %v840 = vpop.permute.xlu0 %839
        %841 = vrot.lane.b32.xlu0 %v725, 64
        %v842 = vpop.permute.xlu0 %841
        %843 = vrot.lane.b32.xlu0 %v727, 64
        %v844 = vpop.permute.xlu0 %843
        %845 = vrot.lane.b32.xlu0 %v729, 64
        %v846 = vpop.permute.xlu0 %845
        %v863 = vrot.slane %v715, 1
        %v864 = vrot.slane %v716, 1
        %v865 = vsel %vm790, %v863, %v864
        %v866 = vrot.slane %v717, 1
        %v867 = vrot.slane %v718, 1
        %v868 = vsel %vm790, %v866, %v867
        %v869 = vrot.slane %v719, 1
        %v870 = vrot.slane %v720, 1
        %v871 = vsel %vm790, %v869, %v870
        %v872 = vrot.slane %v721, 1
        %v873 = vrot.slane %v722, 1
        %v874 = vsel %vm790, %v872, %v873
        %v875 = vrot.slane %v723, 1
        %v876 = vrot.slane %v724, 1
        %v877 = vsel %vm790, %v875, %v876
        %v878 = vrot.slane %v725, 1
        %v879 = vrot.slane %v726, 1
        %v880 = vsel %vm790, %v878, %v879
        %v881 = vrot.slane %v727, 1
        %v882 = vrot.slane %v728, 1
        %v883 = vsel %vm790, %v881, %v882
        %v884 = vrot.slane %v729, 1
        %v885 = vrot.slane %v730, 1
        %v886 = vsel %vm790, %v884, %v885
        %887 = vrot.lane.b32.xlu0 %v865, 64
        %v888 = vpop.permute.xlu0 %887
        %889 = vrot.lane.b32.xlu0 %v868, 64
        %v890 = vpop.permute.xlu0 %889
        %891 = vrot.lane.b32.xlu0 %v871, 64
        %v892 = vpop.permute.xlu0 %891
        %893 = vrot.lane.b32.xlu0 %v874, 64
        %v894 = vpop.permute.xlu0 %893
        %895 = vrot.lane.b32.xlu0 %v877, 64
        %v896 = vpop.permute.xlu0 %895
        %897 = vrot.lane.b32.xlu0 %v880, 64
        %v898 = vpop.permute.xlu0 %897
        %899 = vrot.lane.b32.xlu0 %v883, 64
        %v900 = vpop.permute.xlu0 %899
        %901 = vrot.lane.b32.xlu0 %v886, 64
        %v902 = vpop.permute.xlu0 %901
        %912 = vrot.lane.b32.xlu0 %v741, 64
        %v913 = vpop.permute.xlu0 %912
        %v917 = vrot.slane %v739, 1
        %v918 = vrot.slane %v740, 1
        %v919 = vsel %vm790, %v917, %v918
        %vm920 = vcmask 523264
        %v921 = vsel %vm920, %v691, %v751
        %v922 = vsel %vm920, %v693, %v753
        %v923 = vsel %vm920, %v695, %v755
        %v924 = vsel %vm920, %v697, %v757
        %v925 = vsel %vm920, %v699, %v759
        %v926 = vsel %vm920, %v701, %v761
        %v927 = vsel %vm920, %v703, %v763
        %v928 = vsel %vm920, %v705, %v765
        %v929 = vsel %vm920, %v793, %v832
        %v930 = vsel %vm920, %v796, %v834
        %v931 = vsel %vm920, %v799, %v836
        %v932 = vsel %vm920, %v802, %v838
        %v933 = vsel %vm920, %v805, %v840
        %v934 = vsel %vm920, %v808, %v842
        %v935 = vsel %vm920, %v811, %v844
        %v936 = vsel %vm920, %v814, %v846
        %v937 = vsel %vm920, %v731, %v888
        %v938 = vsel %vm920, %v732, %v890
        %v939 = vsel %vm920, %v733, %v892
        %v940 = vsel %vm920, %v734, %v894
        %v941 = vsel %vm920, %v735, %v896
        %v942 = vsel %vm920, %v736, %v898
        %v943 = vsel %vm920, %v737, %v900
        %v944 = vsel %vm920, %v738, %v902
        %v945 = vsel %vm920, %v739, %v913
        %v946 = vld [vmem:[%s686] sm:$0xff]
        %v947 = vld [vmem:[%s686 + $0x8] sm:$0xff]
        %v948 = vld [vmem:[%s686 + $0x10] sm:$0xff]
        %v949 = vld [vmem:[%s686 + $0x18] sm:$0xff]
        %v950 = vld [vmem:[%s686 + $0x20] sm:$0xff]
        %v951 = vld [vmem:[%s686 + $0x28] sm:$0xff]
        %v952 = vld [vmem:[%s686 + $0x30] sm:$0xff]
        %v953 = vld [vmem:[%s686 + $0x38] sm:$0xff]
        %v954 = vld [vmem:[%s686 + $0x40] sm:$0xff]
        %v955 = vld [vmem:[%s686 + $0x48] sm:$0xff]
        %v956 = vld [vmem:[%s686 + $0x50] sm:$0xff]
        %v957 = vld [vmem:[%s686 + $0x58] sm:$0xff]
        %v958 = vld [vmem:[%s686 + $0x60] sm:$0xff]
        %v959 = vld [vmem:[%s686 + $0x68] sm:$0xff]
        %v960 = vld [vmem:[%s686 + $0x70] sm:$0xff]
        %v961 = vld [vmem:[%s686 + $0x78] sm:$0xff]
        %v962 = vld [vmem:[%s686 + $0x80] sm:$0xff]
        %v963 = vld [vmem:[%s686 + $0x88] sm:$0xff]
        %v964 = vld [vmem:[%s686 + $0x90] sm:$0xff]
        %v965 = vld [vmem:[%s686 + $0x98] sm:$0xff]
        %v966 = vld [vmem:[%s686 + $0xa0] sm:$0xff]
        %v967 = vld [vmem:[%s686 + $0xa8] sm:$0xff]
        %v968 = vld [vmem:[%s686 + $0xb0] sm:$0xff]
        %v969 = vld [vmem:[%s686 + $0xb8] sm:$0xff]
        %v970 = vld [vmem:[%s686 + $0xc0] sm:$0xff]
        %v971 = vld [vmem:[%s686 + $0xc8] sm:$0xff]
        %v972 = vld [vmem:[%s686 + $0xd0] sm:$0xff]
        %v973 = vld [vmem:[%s686 + $0xd8] sm:$0xff]
        %v974 = vld [vmem:[%s686 + $0xe0] sm:$0xff]
        %v975 = vld [vmem:[%s686 + $0xe8] sm:$0xff]
        %v976 = vld [vmem:[%s686 + $0xf0] sm:$0xff]
        %v977 = vld [vmem:[%s686 + $0xf8] sm:$0xff]
        %v978 = vld [vmem:[%s686 + $0x100] sm:$0xff]
        %v979 = vld [vmem:[%s686 + $0x108] sm:$0xff]
        %v980 = vld [vmem:[%s686 + $0x110] sm:$0xff]
        %v981 = vld [vmem:[%s686 + $0x118] sm:$0xff]
        %v982 = vld [vmem:[%s686 + $0x120] sm:$0xff]
        %v983 = vld [vmem:[%s686 + $0x128] sm:$0xff]
        %v984 = vld [vmem:[%s686 + $0x130] sm:$0xff]
        %v985 = vld [vmem:[%s686 + $0x138] sm:$0xff]
        %v986 = vld [vmem:[%s686 + $0x140] sm:$0xff]
        %v987 = vld [vmem:[%s686 + $0x148] sm:$0xff]
        %v988 = vld [vmem:[%s686 + $0x150] sm:$0xff]
        %v989 = vld [vmem:[%s686 + $0x158] sm:$0xff]
        %v990 = vld [vmem:[%s686 + $0x160] sm:$0xff]
        %v991 = vld [vmem:[%s686 + $0x168] sm:$0xff]
        %v992 = vld [vmem:[%s686 + $0x170] sm:$0xff]
        %v993 = vld [vmem:[%s686 + $0x178] sm:$0xff]
        %v994 = vld [vmem:[%s686 + $0x180] sm:$0xff]
        %v995 = vld [vmem:[%s686 + $0x188] sm:$0xff]
        %v996 = vld [vmem:[%s686 + $0x190] sm:$0xff]
        %v997 = vld [vmem:[%s686 + $0x198] sm:$0xff]
        %v998 = vld [vmem:[%s686 + $0x1a0] sm:$0xff]
        %v999 = vld [vmem:[%s686 + $0x1a8] sm:$0xff]
        %v1000 = vld [vmem:[%s686 + $0x1b0] sm:$0xff]
        %v1001 = vld [vmem:[%s686 + $0x1b8] sm:$0xff]
        %v1002 = vld [vmem:[%s686 + $0x1c0] sm:$0xff]
        %v1003 = vld [vmem:[%s686 + $0x1c8] sm:$0xff]
        %v1004 = vld [vmem:[%s686 + $0x1d0] sm:$0xff]
        %v1005 = vld [vmem:[%s686 + $0x1d8] sm:$0xff]
        %v1006 = vld [vmem:[%s686 + $0x1e0] sm:$0xff]
        %v1007 = vld [vmem:[%s686 + $0x1e8] sm:$0xff]
        %v1008 = vld [vmem:[%s686 + $0x1f0] sm:$0xff]
        %v1009 = vld [vmem:[%s686 + $0x1f8] sm:$0xff]
        %v1010 = vld [vmem:[%s686 + $0x200] sm:$0xff]
        %v1011 = vld [vmem:[%s686 + $0x208] sm:$0xff]
        %v1012 = vld [vmem:[%s686 + $0x210] sm:$0xff]
        %v1013 = vld [vmem:[%s686 + $0x218] sm:$0xff]
        %v1014 = vld [vmem:[%s686 + $0x220] sm:$0xff]
        %v1015 = vld [vmem:[%s686 + $0x228] sm:$0xff]
        %v1016 = vld [vmem:[%s686 + $0x230] sm:$0xff]
        %v1017 = vld [vmem:[%s686 + $0x238] sm:$0xff]
        %v1018 = vld [vmem:[%s689] sm:$0x1]
        %v1020 = vlaneseq
        %v1021 = vshrl.u32 %v1020, 7
        %v1022 = vsub.s32 0, %v1021
        %v1023 = vrot.slane %v1018, %v1022
        %v1025 = vsel %vm920, %v796, 0
        %v1027 = vsel %vm920, %v799, 0
        %v1029 = vsel %vm920, %v802, 0
        %v1031 = vsel %vm920, %v805, 0
        %v1033 = vsel %vm920, %v808, 0
        %v1035 = vsel %vm920, %v811, 0
        %v1037 = vsel %vm920, %v814, 0
        %v1039 = vsel %vm920, %v919, 0
        %1041 = vmatprep.subr.mxu0 0.0
        %1042 = vmatpush1.msra.mxu0 %v946
        %1043 = vmatprep.subr.mxu0 0.0
        %1044 = vmatpush1.msra.mxu0 %v947
        %1045 = vmatprep.subr.mxu0 0.0
        %1046 = vmatpush1.msra.mxu0 %v948
        %1047 = vmatprep.subr.mxu0 0.0
        %1048 = vmatpush1.msra.mxu0 %v949
        %1049 = vmatprep.subr.mxu0 0.0
        %1050 = vmatpush1.msra.mxu0 %v950
        %1051 = vmatprep.subr.mxu0 0.0
        %1052 = vmatpush1.msra.mxu0 %v951
        %1053 = vmatprep.subr.mxu0 0.0
        %1054 = vmatpush1.msra.mxu0 %v952
        %1055 = vmatprep.subr.mxu0 0.0
        %1056 = vmatpush1.msra.mxu0 %v953
        %1057 = vmatprep.subr.mxu0 0.0
        %1058 = vmatpush1.msra.mxu0 %v954
        %1059 = vmatprep.subr.mxu0 0.0
        %1060 = vmatpush1.msra.mxu0 %v955
        %1061 = vmatprep.subr.mxu0 0.0
        %1062 = vmatpush1.msra.mxu0 %v956
        %1063 = vmatprep.subr.mxu0 0.0
        %1064 = vmatpush1.msra.mxu0 %v957
        %1065 = vmatprep.subr.mxu0 0.0
        %1066 = vmatpush1.msra.mxu0 %v958
        %1067 = vmatprep.subr.mxu0 0.0
        %1068 = vmatpush1.msra.mxu0 %v959
        %1069 = vmatprep.subr.mxu0 0.0
        %1070 = vmatpush1.msra.mxu0 %v960
        %1071 = vmatprep.subr.mxu0 0.0
        %1072 = vmatpush1.msra.mxu0 %v961
        %1073 = vmatprep.subr.mxu0 0.0
        %1074 = vmatpush1.msra.mxu0 %v962
        %1075 = vmatprep.subr.mxu0 0.0
        %1076 = vmatpush1.msra.mxu0 %v963
        %1077 = vmatprep.subr.mxu0 0.0
        %1078 = vmatpush1.msra.mxu0 %v964
        %1079 = vmatprep.subr.mxu0 0.0
        %1080 = vmatpush1.msra.mxu0 %v965
        %1081 = vmatprep.subr.mxu0 0.0
        %1082 = vmatpush1.msra.mxu0 %v966
        %1083 = vmatprep.subr.mxu0 0.0
        %1084 = vmatpush1.msra.mxu0 %v967
        %1085 = vmatprep.subr.mxu0 0.0
        %1086 = vmatpush1.msra.mxu0 %v968
        %1087 = vmatprep.subr.mxu0 0.0
        %1088 = vmatpush1.msra.mxu0 %v969
        %1089 = vmatprep.subr.mxu0 0.0
        %1090 = vmatpush1.msra.mxu0 %v970
        %1091 = vmatprep.subr.mxu0 0.0
        %1092 = vmatpush1.msra.mxu0 %v971
        %1093 = vmatprep.subr.mxu0 0.0
        %1094 = vmatpush1.msra.mxu0 %v972
        %1095 = vmatprep.subr.mxu0 0.0
        %1096 = vmatpush1.msra.mxu0 %v973
        %1097 = vmatprep.subr.mxu0 0.0
        %1098 = vmatpush1.msra.mxu0 %v974
        %1099 = vmatprep.subr.mxu0 0.0
        %1100 = vmatpush1.msra.mxu0 %v975
        %1101 = vmatprep.subr.mxu0 0.0
        %1102 = vmatpush1.msra.mxu0 %v976
        %1103 = vmatprep.subr.mxu0 0.0
        %1104 = vmatpush1.msra.mxu0 %v977
        %1105 = vmatprep.mubr.f32.mxu0 %v929
        %1106 = vmatmul.mubr.f32.gmra.mrb[0].mxu0 %v921
        %v1107 = vpop.f32.mrb[0].mxu0
        %v1108 = vadd.f32 %v1023, %v1107
        %v1109 = vpop.f32.mrb[0].mxu0
        %1110 = vmatprep.mubr.f32.mxu0 %v930
        %1111 = vmatmul.mubr.f32.gmra.mrb[0].mxu0 %v922
        %v1112 = vpop.f32.mrb[0].mxu0
        %v1113 = vadd.f32 %v1023, %v1112
        %v1114 = vpop.f32.mrb[0].mxu0
        %1115 = vmatprep.mubr.f32.mxu0 %v931
        %1116 = vmatmul.mubr.f32.gmra.mrb[0].mxu0 %v923
        %v1117 = vpop.f32.mrb[0].mxu0
        %v1118 = vadd.f32 %v1023, %v1117
        %v1119 = vpop.f32.mrb[0].mxu0
        %1120 = vmatprep.mubr.f32.mxu0 %v932
        %1121 = vmatmul.mubr.f32.gmra.mrb[0].mxu0 %v924
        %v1122 = vpop.f32.mrb[0].mxu0
        %v1123 = vadd.f32 %v1023, %v1122
        %v1124 = vpop.f32.mrb[0].mxu0
        %1125 = vmatprep.mubr.f32.mxu0 %v933
        %1126 = vmatmul.mubr.f32.gmra.mrb[0].mxu0 %v925
        %v1127 = vpop.f32.mrb[0].mxu0
        %v1128 = vadd.f32 %v1023, %v1127
        %v1129 = vpop.f32.mrb[0].mxu0
        %1130 = vmatprep.mubr.f32.mxu0 %v934
        %1131 = vmatmul.mubr.f32.gmra.mrb[0].mxu0 %v926
        %v1132 = vpop.f32.mrb[0].mxu0
        %v1133 = vadd.f32 %v1023, %v1132
        %v1134 = vpop.f32.mrb[0].mxu0
        %1135 = vmatprep.mubr.f32.mxu0 %v935
        %1136 = vmatmul.mubr.f32.gmra.mrb[0].mxu0 %v927
        %v1137 = vpop.f32.mrb[0].mxu0
        %v1138 = vadd.f32 %v1023, %v1137
        %v1139 = vpop.f32.mrb[0].mxu0
        %1140 = vmatprep.mubr.f32.mxu0 %v936
        %1141 = vmatmul.mubr.f32.gmra.mrb[0].mxu0 %v928
        %v1142 = vpop.f32.mrb[0].mxu0
        %v1143 = vadd.f32 %v1023, %v1142
        %v1144 = vpop.f32.mrb[0].mxu0
        %1145 = vdwg.mxu0
        %1146 = vmatprep.subr.mxu0 0.0
        %1147 = vmatpush1.msra.mxu0 %v978
        %1148 = vmatprep.subr.mxu0 0.0
        %1149 = vmatpush1.msra.mxu0 %v979
        %1150 = vmatprep.subr.mxu0 0.0
        %1151 = vmatpush1.msra.mxu0 %v980
        %1152 = vmatprep.subr.mxu0 0.0
        %1153 = vmatpush1.msra.mxu0 %v981
        %1154 = vmatprep.subr.mxu0 0.0
        %1155 = vmatpush1.msra.mxu0 %v982
        %1156 = vmatprep.subr.mxu0 0.0
        %1157 = vmatpush1.msra.mxu0 %v983
        %1158 = vmatprep.subr.mxu0 0.0
        %1159 = vmatpush1.msra.mxu0 %v984
        %1160 = vmatprep.subr.mxu0 0.0
        %1161 = vmatpush1.msra.mxu0 %v985
        %1162 = vmatprep.subr.mxu0 0.0
        %1163 = vmatpush1.msra.mxu0 %v986
        %1164 = vmatprep.subr.mxu0 0.0
        %1165 = vmatpush1.msra.mxu0 %v987
        %1166 = vmatprep.subr.mxu0 0.0
        %1167 = vmatpush1.msra.mxu0 %v988
        %1168 = vmatprep.subr.mxu0 0.0
        %1169 = vmatpush1.msra.mxu0 %v989
        %1170 = vmatprep.subr.mxu0 0.0
        %1171 = vmatpush1.msra.mxu0 %v990
        %1172 = vmatprep.subr.mxu0 0.0
        %1173 = vmatpush1.msra.mxu0 %v991
        %1174 = vmatprep.subr.mxu0 0.0
        %1175 = vmatpush1.msra.mxu0 %v992
        %1176 = vmatprep.subr.mxu0 0.0
        %1177 = vmatpush1.msra.mxu0 %v993
        %1178 = vmatprep.subr.mxu0 0.0
        %1179 = vmatpush1.msra.mxu0 %v994
        %1180 = vmatprep.subr.mxu0 0.0
        %1181 = vmatpush1.msra.mxu0 %v995
        %1182 = vmatprep.subr.mxu0 0.0
        %1183 = vmatpush1.msra.mxu0 %v996
        %1184 = vmatprep.subr.mxu0 0.0
        %1185 = vmatpush1.msra.mxu0 %v997
        %1186 = vmatprep.subr.mxu0 0.0
        %1187 = vmatpush1.msra.mxu0 %v998
        %1188 = vmatprep.subr.mxu0 0.0
        %1189 = vmatpush1.msra.mxu0 %v999
        %1190 = vmatprep.subr.mxu0 0.0
        %1191 = vmatpush1.msra.mxu0 %v1000
        %1192 = vmatprep.subr.mxu0 0.0
        %1193 = vmatpush1.msra.mxu0 %v1001
        %1194 = vmatprep.subr.mxu0 0.0
        %1195 = vmatpush1.msra.mxu0 %v1002
        %1196 = vmatprep.subr.mxu0 0.0
        %1197 = vmatpush1.msra.mxu0 %v1003
        %1198 = vmatprep.subr.mxu0 0.0
        %1199 = vmatpush1.msra.mxu0 %v1004
        %1200 = vmatprep.subr.mxu0 0.0
        %1201 = vmatpush1.msra.mxu0 %v1005
        %1202 = vmatprep.subr.mxu0 0.0
        %1203 = vmatpush1.msra.mxu0 %v1006
        %1204 = vmatprep.subr.mxu0 0.0
        %1205 = vmatpush1.msra.mxu0 %v1007
        %1206 = vmatprep.subr.mxu0 0.0
        %1207 = vmatpush1.msra.mxu0 %v1008
        %1208 = vmatprep.subr.mxu0 0.0
        %1209 = vmatpush1.msra.mxu0 %v1009
        %1210 = vmatprep.mubr.f32.mxu0 %v922
        %1211 = vmatmul.mubr.f32.gmra.mrb[0].mxu0 %v937
        %v1212 = vpop.f32.mrb[0].mxu0
        %v1213 = vadd.f32 %v1108, %v1212
        %v1214 = vpop.f32.mrb[0].mxu0
        %1215 = vmatprep.mubr.f32.mxu0 %v923
        %1216 = vmatmul.mubr.f32.gmra.mrb[0].mxu0 %v938
        %v1217 = vpop.f32.mrb[0].mxu0
        %v1218 = vadd.f32 %v1113, %v1217
        %v1219 = vpop.f32.mrb[0].mxu0
        %1220 = vmatprep.mubr.f32.mxu0 %v924
        %1221 = vmatmul.mubr.f32.gmra.mrb[0].mxu0 %v939
        %v1222 = vpop.f32.mrb[0].mxu0
        %v1223 = vadd.f32 %v1118, %v1222
        %v1224 = vpop.f32.mrb[0].mxu0
        %1225 = vmatprep.mubr.f32.mxu0 %v925
        %1226 = vmatmul.mubr.f32.gmra.mrb[0].mxu0 %v940
        %v1227 = vpop.f32.mrb[0].mxu0
        %v1228 = vadd.f32 %v1123, %v1227
        %v1229 = vpop.f32.mrb[0].mxu0
        %1230 = vmatprep.mubr.f32.mxu0 %v926
        %1231 = vmatmul.mubr.f32.gmra.mrb[0].mxu0 %v941
        %v1232 = vpop.f32.mrb[0].mxu0
        %v1233 = vadd.f32 %v1128, %v1232
        %v1234 = vpop.f32.mrb[0].mxu0
        %1235 = vmatprep.mubr.f32.mxu0 %v927
        %1236 = vmatmul.mubr.f32.gmra.mrb[0].mxu0 %v942
        %v1237 = vpop.f32.mrb[0].mxu0
        %v1238 = vadd.f32 %v1133, %v1237
        %v1239 = vpop.f32.mrb[0].mxu0
        %1240 = vmatprep.mubr.f32.mxu0 %v928
        %1241 = vmatmul.mubr.f32.gmra.mrb[0].mxu0 %v943
        %v1242 = vpop.f32.mrb[0].mxu0
        %v1243 = vadd.f32 %v1138, %v1242
        %v1244 = vpop.f32.mrb[0].mxu0
        %1245 = vmatprep.mubr.f32.mxu0 %v945
        %1246 = vmatmul.mubr.f32.gmra.mrb[0].mxu0 %v944
        %v1247 = vpop.f32.mrb[0].mxu0
        %v1248 = vadd.f32 %v1143, %v1247
        %v1249 = vpop.f32.mrb[0].mxu0
        %1250 = vdwg.mxu0
        %1251 = vmatprep.subr.mxu0 0.0
        %1252 = vmatpush1.msra.mxu0 %v1010
        %1253 = vmatprep.subr.mxu0 0.0
        %1254 = vmatpush1.msra.mxu0 %v1011
        %1255 = vmatprep.subr.mxu0 0.0
        %1256 = vmatpush1.msra.mxu0 %v1012
        %1257 = vmatprep.subr.mxu0 0.0
        %1258 = vmatpush1.msra.mxu0 %v1013
        %1259 = vmatprep.subr.mxu0 0.0
        %1260 = vmatpush1.msra.mxu0 %v1014
        %1261 = vmatprep.subr.mxu0 0.0
        %1262 = vmatpush1.msra.mxu0 %v1015
        %1263 = vmatprep.subr.mxu0 0.0
        %1264 = vmatpush1.msra.mxu0 %v1016
        %1265 = vmatprep.subr.mxu0 0.0
        %1266 = vmatpush1.msra.mxu0 %v1017
        %1267 = vmatprep.subr.mxu0 0.0
        %1268 = vmatpush1.msra.mxu0 0.0
        %1269 = vmatprep.subr.mxu0 0.0
        %1270 = vmatpush1.msra.mxu0 0.0
        %1271 = vmatprep.subr.mxu0 0.0
        %1272 = vmatpush1.msra.mxu0 0.0
        %1273 = vmatprep.subr.mxu0 0.0
        %1274 = vmatpush1.msra.mxu0 0.0
        %1275 = vmatprep.subr.mxu0 0.0
        %1276 = vmatpush1.msra.mxu0 0.0
        %1277 = vmatprep.subr.mxu0 0.0
        %1278 = vmatpush1.msra.mxu0 0.0
        %1279 = vmatprep.subr.mxu0 0.0
        %1280 = vmatpush1.msra.mxu0 0.0
        %1281 = vmatprep.subr.mxu0 0.0
        %1282 = vmatpush1.msra.mxu0 0.0
        %1283 = vmatprep.subr.mxu0 0.0
        %1284 = vmatpush1.msra.mxu0 0.0
        %1285 = vmatprep.subr.mxu0 0.0
        %1286 = vmatpush1.msra.mxu0 0.0
        %1287 = vmatprep.subr.mxu0 0.0
        %1288 = vmatpush1.msra.mxu0 0.0
        %1289 = vmatprep.subr.mxu0 0.0
        %1290 = vmatpush1.msra.mxu0 0.0
        %1291 = vmatprep.subr.mxu0 0.0
        %1292 = vmatpush1.msra.mxu0 0.0
        %1293 = vmatprep.subr.mxu0 0.0
        %1294 = vmatpush1.msra.mxu0 0.0
        %1295 = vmatprep.subr.mxu0 0.0
        %1296 = vmatpush1.msra.mxu0 0.0
        %1297 = vmatprep.subr.mxu0 0.0
        %1298 = vmatpush1.msra.mxu0 0.0
        %1299 = vmatprep.subr.mxu0 0.0
        %1300 = vmatpush1.msra.mxu0 0.0
        %1301 = vmatprep.subr.mxu0 0.0
        %1302 = vmatpush1.msra.mxu0 0.0
        %1303 = vmatprep.subr.mxu0 0.0
        %1304 = vmatpush1.msra.mxu0 0.0
        %1305 = vmatprep.subr.mxu0 0.0
        %1306 = vmatpush1.msra.mxu0 0.0
        %1307 = vmatprep.subr.mxu0 0.0
        %1308 = vmatpush1.msra.mxu0 0.0
        %1309 = vmatprep.subr.mxu0 0.0
        %1310 = vmatpush1.msra.mxu0 0.0
        %1311 = vmatprep.subr.mxu0 0.0
        %1312 = vmatpush1.msra.mxu0 0.0
        %1313 = vmatprep.subr.mxu0 0.0
        %1314 = vmatpush1.msra.mxu0 0.0
        %1315 = vmatprep.mubr.f32.mxu0 0.0
        %1316 = vmatmul.mubr.f32.gmra.mrb[0].mxu0 %v1025
        %v1317 = vpop.f32.mrb[0].mxu0
        %v1318 = vadd.f32 %v1213, %v1317
        %v1319 = vpop.f32.mrb[0].mxu0
        %1320 = vmatprep.mubr.f32.mxu0 0.0
        %1321 = vmatmul.mubr.f32.gmra.mrb[0].mxu0 %v1027
        %v1322 = vpop.f32.mrb[0].mxu0
        %v1323 = vadd.f32 %v1218, %v1322
        %v1324 = vpop.f32.mrb[0].mxu0
        %1325 = vmatprep.mubr.f32.mxu0 0.0
        %1326 = vmatmul.mubr.f32.gmra.mrb[0].mxu0 %v1029
        %v1327 = vpop.f32.mrb[0].mxu0
        %v1328 = vadd.f32 %v1223, %v1327
        %v1329 = vpop.f32.mrb[0].mxu0
        %1330 = vmatprep.mubr.f32.mxu0 0.0
        %1331 = vmatmul.mubr.f32.gmra.mrb[0].mxu0 %v1031
        %v1332 = vpop.f32.mrb[0].mxu0
        %v1333 = vadd.f32 %v1228, %v1332
        %v1334 = vpop.f32.mrb[0].mxu0
        %1335 = vmatprep.mubr.f32.mxu0 0.0
        %1336 = vmatmul.mubr.f32.gmra.mrb[0].mxu0 %v1033
        %v1337 = vpop.f32.mrb[0].mxu0
        %v1338 = vadd.f32 %v1233, %v1337
        %v1339 = vpop.f32.mrb[0].mxu0
        %1340 = vmatprep.mubr.f32.mxu0 0.0
        %1341 = vmatmul.mubr.f32.gmra.mrb[0].mxu0 %v1035
        %v1342 = vpop.f32.mrb[0].mxu0
        %v1343 = vadd.f32 %v1238, %v1342
        %v1344 = vpop.f32.mrb[0].mxu0
        %1345 = vmatprep.mubr.f32.mxu0 0.0
        %1346 = vmatmul.mubr.f32.gmra.mrb[0].mxu0 %v1037
        %v1347 = vpop.f32.mrb[0].mxu0
        %v1348 = vadd.f32 %v1243, %v1347
        %v1349 = vpop.f32.mrb[0].mxu0
        %1350 = vmatprep.mubr.f32.mxu0 0.0
        %1351 = vmatmul.mubr.f32.gmra.mrb[0].mxu0 %v1039
        %v1352 = vpop.f32.mrb[0].mxu0
        %v1353 = vadd.f32 %v1248, %v1352
        %v1354 = vpop.f32.mrb[0].mxu0
        %1355 = vdwg.mxu0
        %1356 = vst.msk [vmem:[%s572] sm:$0xff] %vm920, %v1318
        %1357 = vst.msk [vmem:[%s572 + $0x8] sm:$0xff] %vm920, %v1323
        %1358 = vst.msk [vmem:[%s572 + $0x10] sm:$0xff] %vm920, %v1328
        %1359 = vst.msk [vmem:[%s572 + $0x18] sm:$0xff] %vm920, %v1333
        %1360 = vst.msk [vmem:[%s572 + $0x20] sm:$0xff] %vm920, %v1338
        %1361 = vst.msk [vmem:[%s572 + $0x28] sm:$0xff] %vm920, %v1343
        %1362 = vst.msk [vmem:[%s572 + $0x30] sm:$0xff] %vm920, %v1348
        %1363 = vst.msk [vmem:[%s572 + $0x38] sm:$0xff] %vm920, %v1353
        %s1364 = sand.u32 %s281, 1
        %s1365 = scalar_lea.sflag [#allocation3], %s1364
        %s1366 = sand.u32 %s281, 1
        %s1367 = smul.addr %s1366, 64
        %s1368 = scalar_lea.vmem [#allocation2], %s1367
        // Predicated region
        $region53: #{_lambda_.1} parent=51 // pred_check
          %p1369 = pneg %p291
        $region54: #{_lambda_.1} parent=51 // pred_check_branch
          %1371 = sbr.rel (%p1369) target = $region56
        $region55: #{_lambda_.1} parent=51 // pred_region
          %s1372 = smul.u32 8, %s28
          %s1374 = ssub.s32 1024, 1024
          %1375 = vsyncadd %s1365, %s1374
          %s1376 = sadd.s32 %s29, %s1372
          %s1377 = smul.addr %s27, 8
          %s1378 = sadd.s32 %s1376, %s1377
          %s1379 = smul.addr %s1378, 128
          %s1380 = scalar_lea.hbm %s8, %s1379
          %s1381 = sshll.u32 %s1368, 4
          %s1382 = int_to_ptr.vmem [resolvable:$true] %s1381
          %1387 = dma.vmem_to_hbm [thread:$0]  %s1382, 1024, %s1380, %s1365, 128, 128, 8
        $region56: #{_lambda_.1} parent=51 // pred_fallthru
          _
      $region52: #{_lambda_.1} parent=5 // pred_fallthru
        _
      %p1388 = scmp.le.s32.totalorder 2, %s17
      // Predicated region
      $region57: #{_lambda_.1} parent=5 // pred_check
        %p1389 = pneg %p1388
      $region58: #{_lambda_.1} parent=5 // pred_check_branch
        %1391 = sbr.rel (%p1389) target = $region60
      $region59: #{_lambda_.1} parent=5 // pred_region
        %s1392 = ssub.s32 %s17, 2
        // Predicated region
        $region61: #{_lambda_.1} parent=59 // pred_check
          %p1393 = pneg %p297
        $region62: #{_lambda_.1} parent=59 // pred_check_branch
          %1395 = sbr.rel (%p1393) target = $region64
        $region63: #{_lambda_.1} parent=59 // pred_region
          %s1396 = sand.u32 %s282, 1
          %s1397 = scalar_lea.sflag [#allocation3], %s1396
          %s1398 = sand.u32 %s282, 1
          %s1399 = smul.addr %s1398, 64
          %s1400 = scalar_lea.vmem [#allocation2], %s1399
          %1401 = dma.done %s1397, 1024
        $region64: #{_lambda_.1} parent=59 // pred_fallthru
          _
      $region60: #{_lambda_.1} parent=5 // pred_fallthru
        _
    $region6: #{_lambda_.1} parent=1 // loop_footer
      %s21 = sadd.s32 1, %s17
    $region7: #{_lambda_.1} parent=1 // loop_footer_branch
      %16 = sbr.rel target = $region3
    $region8: #{_lambda_.1} parent=1 // loop_exit
      _
    %1402 = vsyncpa [#allocation3], 1
    %s1403 = scalar_lea.sflag [#allocation3], 1
    %1404 = vsyncpa %s1403, 1

</llo_original>
